<compile_context>
chip_gen: v7x
topology: tpu7x:2x2x1
jax: 0.10.0
libtpu: 0.0.40
codegen_flags: <defaults>
</compile_context>

<pallas_src>
import math

import jax
import jax.numpy as jnp
from jax.experimental import pallas as pl
from jax.experimental.pallas import tpu as pltpu

MASK_THRESH = 0.1    # maskCreate: mask = (I > thresh)
EPS_NORM = 1e-6      # guards for Kb and class-center denominators (reconstruction)
EPS_TORCH = 1e-9     # matches the torch reference's (bd + 1e-9) / (db + 1e-9)


def _gaussian_taps_1d(sigma: int):
    """Normalized 1-D Gaussian taps (length 4*sigma+1); the 2-D filter is separable."""
    k = 4 * sigma + 1
    c = k // 2
    g = [math.exp(-((i - c) ** 2) / (2.0 * sigma ** 2)) for i in range(k)]
    s = sum(g)
    return [t / s for t in g], k


def _banded_toeplitz(n: int, taps):
    """(n, n) banded Toeplitz implementing a 'same' zero-padded 1-D conv."""
    K = len(taps)
    pad = K // 2
    rows = []
    for i in range(n):
        row = [0.0] * n
        for off in range(-pad, pad + 1):
            k = i + off
            if 0 <= k < n:
                row[k] = taps[off + pad]
        rows.append(row)
    return jnp.asarray(rows, dtype=jnp.float32)


def _make_kernel(C: int, H: int, W: int, p: int):
    def kernel(I_ref, u_ref, b_ref, th_ref, tw_ref, out_ref):
        TH = th_ref[...]            # (H, H) bf16 column-pass Toeplitz
        TW = tw_ref[...]            # (W, W) bf16 row-pass Toeplitz

        def conv_group(imgs):
            """Batched separable 'same' Gaussian conv of n (H, W) images.

            Row pass:    one (n*H, W) @ (W, W) MXU matmul (sublane-stacked).
            Column pass: one (H, H) @ (H, n*W) MXU matmul (lane-stacked).
            2 matmuls per group instead of 2*n; bf16 operands, f32 accumulate.
            """
            n = len(imgs)
            xs = jnp.concatenate([x.astype(jnp.bfloat16) for x in imgs], axis=0)
            ys = jnp.dot(xs, TW, preferred_element_type=jnp.float32)        # (n*H, W)
            yw = jnp.concatenate(
                [ys[i * H:(i + 1) * H, :].astype(jnp.bfloat16) for i in range(n)],
                axis=1)                                                      # (H, n*W)
            zw = jnp.dot(TH, yw, preferred_element_type=jnp.float32)        # (H, n*W)
            return [zw[:, i * W:(i + 1) * W] for i in range(n)]

        def int_pow(x, q):
            if q <= 0:
                return jnp.ones_like(x)
            y = x
            for _ in range(q - 1):
                y = y * x
            return y

        def sum_hw(x):  # (C, H, W) -> (C, 1, 1): lane reduce then sublane reduce
            return jnp.sum(jnp.sum(x, axis=2, keepdims=True), axis=1, keepdims=True)

        I = I_ref[...].astype(jnp.float32)                 # (H, W)
        b = b_ref[...].astype(jnp.float32)                 # (H, W)
        b2 = b * b
        mask = jnp.where(I > MASK_THRESH, 1.0, 0.0)        # maskCreate

        conv_mask, conv_b, conv_b2 = conv_group([mask, b, b2])
        Kb = conv_mask + EPS_NORM                          # partialFilter(mask, Kbsize)
        inv_Kb = 1.0 / Kb            # exact divide: Kb is small near borders
        Kb_b = conv_b * inv_Kb       # convParFilt(b_detach, Kb)
        Kb_b2 = conv_b2 * inv_Kb     # convParFilt(b_detach**2, Kb)
        num_base = Kb_b * I

        # classCenter, vectorized over classes: two batched reductions replace
        # 2*C serialized full-tile reductions; no num -> v_j -> A serial chain.
        Up = int_pow(u_ref[...].astype(jnp.float32), p)    # (C, H, W) = u^p
        num = sum_hw(Up * num_base)                        # (C, 1, 1)
        den = sum_hw(Up * Kb_b2) + EPS_NORM                # (C, 1, 1)
        v = num / den                                      # class centers (exact divide)

        # Conv is linear: Sum_j conv(v_j * Up_j * I) == conv(Sum_j v_j * Up_j * I).
        A = jnp.sum(v * Up, axis=0) * I                    # (H, W)
        Bacc = jnp.sum((v * v) * Up, axis=0)               # (H, W)

        conv_A, conv_Bacc = conv_group([A, Bacc])
        KIcu = conv_A * inv_Kb
        cKbu = conv_Bacc * inv_Kb

        bd = KIcu * mask + (1.0 - mask)
        db = cKbu * mask + (1.0 - mask)
        b_new = (bd + EPS_TORCH) / (db + EPS_TORCH)        # exact divide (matches torch)
        diff = b - b_new
        mse = jnp.mean(diff * diff)                        # per-batch loss

        # Lane-dense (8, 128) slab per batch element -> unmasked full-tile store.
        out_ref[...] = jnp.broadcast_to(mse, (8, 128)).astype(jnp.float32)

    return kernel


def bias_predict_loss(I, u, b, p, sigma):
    B, C, H, W = u.shape
    taps1d, _K = _gaussian_taps_1d(int(sigma))
    T_H = _banded_toeplitz(H, taps1d).astype(jnp.bfloat16)   # bf16 taps: MXU-native
    T_W = _banded_toeplitz(W, taps1d).astype(jnp.bfloat16)

    I = I.astype(jnp.float32)
    b = b.astype(jnp.float32)
    u_bf16 = u.astype(jnp.bfloat16)        # largest input -> bf16 halves HBM/VMEM bytes

    kernel = _make_kernel(C, H, W, int(p))

    # Explicit VMEM budget: double-buffered I/u/b blocks + resident taps + live temps.
    blk_in = C * H * W * 2 + 2 * H * W * 4
    taps_bytes = (H * H + W * W) * 2
    temps = (3 * C + 24) * H * W * 4
    est = 2 * blk_in + 2 * taps_bytes + temps + 2 * 8 * 128 * 4
    try:
        phys_vmem = int(pltpu.get_tpu_info().vmem_capacity_bytes)
    except Exception:
        phys_vmem = 64 * 1024 * 1024       # v7x per-TC VMEM (smallest in the fleet)
    vmem_limit = int(min(phys_vmem, max(32 * 1024 * 1024, 2 * est)))

    def call(single_buffer_taps: bool):
        if single_buffer_taps:
            # Grid-invariant taps: single buffer (no pointless double-buffering).
            th_spec = pl.BlockSpec((H, H), lambda i: (0, 0), pipeline_mode=pl.Buffered(1))
            tw_spec = pl.BlockSpec((W, W), lambda i: (0, 0), pipeline_mode=pl.Buffered(1))
        else:
            th_spec = pl.BlockSpec((H, H), lambda i: (0, 0))
            tw_spec = pl.BlockSpec((W, W), lambda i: (0, 0))

        grid_spec = pltpu.PrefetchScalarGridSpec(
            num_scalar_prefetch=0,
            grid=(B,),
            in_specs=[
                pl.BlockSpec((None, None, H, W), lambda i: (i, 0, 0, 0)),   # I
                pl.BlockSpec((None, C, H, W), lambda i: (i, 0, 0, 0)),      # u (bf16)
                pl.BlockSpec((None, None, H, W), lambda i: (i, 0, 0, 0)),   # b
                th_spec,                                                    # T_H (resident)
                tw_spec,                                                    # T_W (resident)
            ],
            out_specs=pl.BlockSpec((None, 8, 128), lambda i: (i, 0, 0)),
        )
        out = pl.pallas_call(
            kernel,
            grid_spec=grid_spec,
            out_shape=jax.ShapeDtypeStruct((B, 8, 128), jnp.float32),
            compiler_params=pltpu.CompilerParams(
                dimension_semantics=("parallel",),   # batch elements are independent
                vmem_limit_bytes=vmem_limit,
            ),
        )(I, u_bf16, b, T_H, T_W)
        return jax.block_until_ready(out)

    try:
        per_batch = call(True)
    except Exception:
        # Fallback if this jax build rejects pl.Buffered(1) for invariant inputs.
        per_batch = call(False)

    losses = per_batch[:, 0, 0]                    # one scalar per batch element
    return (jnp.sum(losses) / B).reshape(1)        # matches torch: loss_sum / B, shape (1,)


def _reference_loss(I, u, b, p, sigma):
    """Pure-JAX mirror of the kernel math (same bf16 casts on the conv/MXU path)."""
    B, C, H, W = u.shape
    taps1d, _ = _gaussian_taps_1d(int(sigma))
    TH = _banded_toeplitz(H, taps1d).astype(jnp.bfloat16)
    TW = _banded_toeplitz(W, taps1d).astype(jnp.bfloat16)

    def conv(x):
        y = jnp.dot(x.astype(jnp.bfloat16), TW, preferred_element_type=jnp.float32)
        return jnp.dot(TH, y.astype(jnp.bfloat16), preferred_element_type=jnp.float32)

    total = jnp.zeros((), jnp.float32)
    for i in range(B):
        Ii = I[i, 0].astype(jnp.float32)
        bi = b[i, 0].astype(jnp.float32)
        ui = u[i].astype(jnp.bfloat16).astype(jnp.float32)
        b2 = bi * bi
        mask = jnp.where(Ii > MASK_THRESH, 1.0, 0.0)
        Kb = conv(mask) + EPS_NORM
        inv_Kb = 1.0 / Kb
        Kb_b = conv(bi) * inv_Kb
        Kb_b2 = conv(b2) * inv_Kb
        num_base = Kb_b * Ii
        Up = ui ** p
        num = jnp.sum(Up * num_base, axis=(1, 2))
        den = jnp.sum(Up * Kb_b2, axis=(1, 2)) + EPS_NORM
        v = num / den
        A = jnp.sum(v[:, None, None] * Up, axis=0) * Ii
        Bacc = jnp.sum((v * v)[:, None, None] * Up, axis=0)
        KIcu = conv(A) * inv_Kb
        cKbu = conv(Bacc) * inv_Kb
        bd = KIcu * mask + (1.0 - mask)
        db = cKbu * mask + (1.0 - mask)
        b_new = (bd + EPS_TORCH) / (db + EPS_TORCH)
        total = total + jnp.mean((bi - b_new) ** 2)
    return (total / B).reshape(1)


if __name__ == "__main__":
    key = jax.random.PRNGKey(0)
    B, C, H, W = 2, 4, 16, 16
    p, sigma = 2, 1

    k1, k2, k3 = jax.random.split(key, 3)
    I = jax.random.uniform(k1, (B, 1, H, W), jnp.float32)                          # intensities
    u = jax.nn.softmax(jax.random.normal(k2, (B, C, H, W), jnp.float32), axis=1)   # memberships
    b = 1.0 + 0.1 * jax.random.normal(k3, (B, 1, H, W), jnp.float32)               # bias field ~ 1

    loss = bias_predict_loss(I, u, b, p, sigma)
    loss = jax.block_until_ready(loss)
    assert loss.shape == (1,) and bool(jnp.isfinite(loss).all())

    ref = jax.block_until_ready(_reference_loss(I, u, b, p, sigma))
    rel_err = abs(float(loss[0]) - float(ref[0])) / max(abs(float(ref[0])), 1e-6)
    assert rel_err < 5e-2, f"kernel {float(loss[0])} vs reference {float(ref[0])} (rel {rel_err})"

    print("KERNEL_OK")
</pallas_src>

<mosaic_0001>
module attributes {stable_mosaic.version = 11 : i64} {
  func.func @kernel(%arg0: i32, %arg1: memref<1x1x16x16xf32, #tpu.memory_space<vmem>>, %arg2: memref<1x4x16x16xbf16, #tpu.memory_space<vmem>>, %arg3: memref<1x1x16x16xf32, #tpu.memory_space<vmem>>, %arg4: memref<16x16xbf16, #tpu.memory_space<vmem>>, %arg5: memref<16x16xbf16, #tpu.memory_space<vmem>>, %arg6: memref<1x8x128xf32, #tpu.memory_space<vmem>>) attributes {dimension_semantics = [#tpu.dimension_semantics<parallel>], iteration_bounds = array<i64: 2>, scalar_prefetch = 0 : i64, scratch_operands = 0 : i64, tpu.core_type = #tpu.core_type<tc>, window_params = [{transform_indices = @transform_0, window_bounds = array<i64: 1, 1, 16, 16>}, {transform_indices = @transform_1, window_bounds = array<i64: 1, 4, 16, 16>}, {transform_indices = @transform_2, window_bounds = array<i64: 1, 1, 16, 16>}, {pipeline_mode = #tpu.pipeline_mode<synchronous>, transform_indices = @transform_3, window_bounds = array<i64: 16, 16>}, {pipeline_mode = #tpu.pipeline_mode<synchronous>, transform_indices = @transform_4, window_bounds = array<i64: 16, 16>}, {transform_indices = @transform_5, window_bounds = array<i64: 1, 8, 128>}]} {
    %c0 = arith.constant 0 : index
    %c0_0 = arith.constant 0 : index
    %0 = vector.load %arg4[%c0, %c0_0] : memref<16x16xbf16, #tpu.memory_space<vmem>>, vector<16x16xbf16>
    %c0_1 = arith.constant 0 : index
    %c0_2 = arith.constant 0 : index
    %1 = vector.load %arg5[%c0_1, %c0_2] : memref<16x16xbf16, #tpu.memory_space<vmem>>, vector<16x16xbf16>
    %c0_3 = arith.constant 0 : index
    %c0_4 = arith.constant 0 : index
    %c0_5 = arith.constant 0 : index
    %c0_6 = arith.constant 0 : index
    %2 = vector.load %arg1[%c0_3, %c0_4, %c0_5, %c0_6] : memref<1x1x16x16xf32, #tpu.memory_space<vmem>>, vector<1x1x16x16xf32>
    %3 = vector.shape_cast %2 : vector<1x1x16x16xf32> to vector<16x16xf32>
    %c0_7 = arith.constant 0 : index
    %c0_8 = arith.constant 0 : index
    %c0_9 = arith.constant 0 : index
    %c0_10 = arith.constant 0 : index
    %4 = vector.load %arg3[%c0_7, %c0_8, %c0_9, %c0_10] : memref<1x1x16x16xf32, #tpu.memory_space<vmem>>, vector<1x1x16x16xf32>
    %5 = vector.shape_cast %4 : vector<1x1x16x16xf32> to vector<16x16xf32>
    %6 = arith.mulf %5, %5 : vector<16x16xf32>
    %cst = arith.constant 1.000000e-01 : f32
    %7 = vector.broadcast %cst : f32 to vector<16x16xf32>
    %8 = arith.cmpf ogt, %3, %7 : vector<16x16xf32>
    %cst_11 = arith.constant 1.000000e+00 : f32
    %cst_12 = arith.constant 0.000000e+00 : f32
    %9 = vector.broadcast %cst_11 : f32 to vector<16x16xf32>
    %10 = vector.broadcast %cst_12 : f32 to vector<16x16xf32>
    %11 = arith.select %8, %9, %10 : vector<16x16xi1>, vector<16x16xf32>
    %12 = arith.truncf %11 : vector<16x16xf32> to vector<16x16xbf16>
    %13 = arith.truncf %5 : vector<16x16xf32> to vector<16x16xbf16>
    %14 = arith.truncf %6 : vector<16x16xf32> to vector<16x16xbf16>
    %15 = tpu.concatenate %12, %13, %14 in 0 : vector<16x16xbf16>, vector<16x16xbf16>, vector<16x16xbf16> -> vector<48x16xbf16>
    %cst_13 = arith.constant dense<0.000000e+00> : vector<48x16xf32>
    %16 = tpu.matmul %15, %1, %cst_13 {dimension_numbers = #tpu.dot_dimension_numbers<[1], [0], [0], [1], [0, 0, 1, 1], [], []>} : vector<48x16xbf16>, vector<16x16xbf16>, vector<48x16xf32> -> vector<48x16xf32>
    %17 = vector.extract_strided_slice %16 {offsets = [0, 0], sizes = [16, 16], strides = [1, 1]} : vector<48x16xf32> to vector<16x16xf32>
    %18 = arith.truncf %17 : vector<16x16xf32> to vector<16x16xbf16>
    %19 = vector.extract_strided_slice %16 {offsets = [16, 0], sizes = [16, 16], strides = [1, 1]} : vector<48x16xf32> to vector<16x16xf32>
    %20 = arith.truncf %19 : vector<16x16xf32> to vector<16x16xbf16>
    %21 = vector.extract_strided_slice %16 {offsets = [32, 0], sizes = [16, 16], strides = [1, 1]} : vector<48x16xf32> to vector<16x16xf32>
    %22 = arith.truncf %21 : vector<16x16xf32> to vector<16x16xbf16>
    %23 = tpu.concatenate %18, %20, %22 in 1 : vector<16x16xbf16>, vector<16x16xbf16>, vector<16x16xbf16> -> vector<16x48xbf16>
    %cst_14 = arith.constant dense<0.000000e+00> : vector<16x48xf32>
    %24 = tpu.matmul %0, %23, %cst_14 {dimension_numbers = #tpu.dot_dimension_numbers<[1], [0], [0], [1], [0, 0, 1, 1], [], []>} : vector<16x16xbf16>, vector<16x48xbf16>, vector<16x48xf32> -> vector<16x48xf32>
    %25 = vector.extract_strided_slice %24 {offsets = [0, 0], sizes = [16, 16], strides = [1, 1]} : vector<16x48xf32> to vector<16x16xf32>
    %26 = vector.extract_strided_slice %24 {offsets = [0, 16], sizes = [16, 16], strides = [1, 1]} : vector<16x48xf32> to vector<16x16xf32>
    %27 = vector.extract_strided_slice %24 {offsets = [0, 32], sizes = [16, 16], strides = [1, 1]} : vector<16x48xf32> to vector<16x16xf32>
    %cst_15 = arith.constant 9.99999997E-7 : f32
    %28 = vector.broadcast %cst_15 : f32 to vector<16x16xf32>
    %29 = arith.addf %25, %28 : vector<16x16xf32>
    %cst_16 = arith.constant 1.000000e+00 : f32
    %30 = vector.broadcast %cst_16 : f32 to vector<16x16xf32>
    %31 = arith.divf %30, %29 : vector<16x16xf32>
    %32 = arith.mulf %26, %31 : vector<16x16xf32>
    %33 = arith.mulf %27, %31 : vector<16x16xf32>
    %34 = arith.mulf %32, %3 : vector<16x16xf32>
    %c0_17 = arith.constant 0 : index
    %c0_18 = arith.constant 0 : index
    %c0_19 = arith.constant 0 : index
    %c0_20 = arith.constant 0 : index
    %35 = vector.load %arg2[%c0_17, %c0_18, %c0_19, %c0_20] : memref<1x4x16x16xbf16, #tpu.memory_space<vmem>>, vector<1x4x16x16xbf16>
    %36 = vector.shape_cast %35 : vector<1x4x16x16xbf16> to vector<4x16x16xbf16>
    %37 = arith.extf %36 : vector<4x16x16xbf16> to vector<4x16x16xf32>
    %38 = arith.mulf %37, %37 : vector<4x16x16xf32>
    %39 = vector.shape_cast %34 : vector<16x16xf32> to vector<1x16x16xf32>
    %40 = vector.broadcast %39 : vector<1x16x16xf32> to vector<4x16x16xf32>
    %41 = arith.mulf %38, %40 : vector<4x16x16xf32>
    %cst_21 = arith.constant dense<0.000000e+00> : vector<4x16xf32>
    %42 = vector.multi_reduction <add>, %41, %cst_21 [2] : vector<4x16x16xf32> to vector<4x16xf32>
    %43 = vector.shape_cast %42 : vector<4x16xf32> to vector<4x16x1xf32>
    %cst_22 = arith.constant dense<0.000000e+00> : vector<4x1xf32>
    %44 = vector.multi_reduction <add>, %43, %cst_22 [1] : vector<4x16x1xf32> to vector<4x1xf32>
    %45 = vector.shape_cast %44 : vector<4x1xf32> to vector<4x1x1xf32>
    %46 = vector.shape_cast %33 : vector<16x16xf32> to vector<1x16x16xf32>
    %47 = vector.broadcast %46 : vector<1x16x16xf32> to vector<4x16x16xf32>
    %48 = arith.mulf %38, %47 : vector<4x16x16xf32>
    %cst_23 = arith.constant dense<0.000000e+00> : vector<4x16xf32>
    %49 = vector.multi_reduction <add>, %48, %cst_23 [2] : vector<4x16x16xf32> to vector<4x16xf32>
    %50 = vector.shape_cast %49 : vector<4x16xf32> to vector<4x16x1xf32>
    %cst_24 = arith.constant dense<0.000000e+00> : vector<4x1xf32>
    %51 = vector.multi_reduction <add>, %50, %cst_24 [1] : vector<4x16x1xf32> to vector<4x1xf32>
    %52 = vector.shape_cast %51 : vector<4x1xf32> to vector<4x1x1xf32>
    %cst_25 = arith.constant 9.99999997E-7 : f32
    %53 = vector.broadcast %cst_25 : f32 to vector<4x1x1xf32>
    %54 = arith.addf %52, %53 : vector<4x1x1xf32>
    %55 = arith.divf %45, %54 : vector<4x1x1xf32>
    %56 = vector.broadcast %55 : vector<4x1x1xf32> to vector<4x16x16xf32>
    %57 = arith.mulf %56, %38 : vector<4x16x16xf32>
    %cst_26 = arith.constant dense<0.000000e+00> : vector<16x16xf32>
    %58 = vector.multi_reduction <add>, %57, %cst_26 [0] : vector<4x16x16xf32> to vector<16x16xf32>
    %59 = arith.mulf %58, %3 : vector<16x16xf32>
    %60 = arith.mulf %55, %55 : vector<4x1x1xf32>
    %61 = vector.broadcast %60 : vector<4x1x1xf32> to vector<4x16x16xf32>
    %62 = arith.mulf %61, %38 : vector<4x16x16xf32>
    %cst_27 = arith.constant dense<0.000000e+00> : vector<16x16xf32>
    %63 = vector.multi_reduction <add>, %62, %cst_27 [0] : vector<4x16x16xf32> to vector<16x16xf32>
    %64 = arith.truncf %59 : vector<16x16xf32> to vector<16x16xbf16>
    %65 = arith.truncf %63 : vector<16x16xf32> to vector<16x16xbf16>
    %66 = tpu.concatenate %64, %65 in 0 : vector<16x16xbf16>, vector<16x16xbf16> -> vector<32x16xbf16>
    %cst_28 = arith.constant dense<0.000000e+00> : vector<32x16xf32>
    %67 = tpu.matmul %66, %1, %cst_28 {dimension_numbers = #tpu.dot_dimension_numbers<[1], [0], [0], [1], [0, 0, 1, 1], [], []>} : vector<32x16xbf16>, vector<16x16xbf16>, vector<32x16xf32> -> vector<32x16xf32>
    %68 = vector.extract_strided_slice %67 {offsets = [0, 0], sizes = [16, 16], strides = [1, 1]} : vector<32x16xf32> to vector<16x16xf32>
    %69 = arith.truncf %68 : vector<16x16xf32> to vector<16x16xbf16>
    %70 = vector.extract_strided_slice %67 {offsets = [16, 0], sizes = [16, 16], strides = [1, 1]} : vector<32x16xf32> to vector<16x16xf32>
    %71 = arith.truncf %70 : vector<16x16xf32> to vector<16x16xbf16>
    %72 = tpu.concatenate %69, %71 in 1 : vector<16x16xbf16>, vector<16x16xbf16> -> vector<16x32xbf16>
    %cst_29 = arith.constant dense<0.000000e+00> : vector<16x32xf32>
    %73 = tpu.matmul %0, %72, %cst_29 {dimension_numbers = #tpu.dot_dimension_numbers<[1], [0], [0], [1], [0, 0, 1, 1], [], []>} : vector<16x16xbf16>, vector<16x32xbf16>, vector<16x32xf32> -> vector<16x32xf32>
    %74 = vector.extract_strided_slice %73 {offsets = [0, 0], sizes = [16, 16], strides = [1, 1]} : vector<16x32xf32> to vector<16x16xf32>
    %75 = vector.extract_strided_slice %73 {offsets = [0, 16], sizes = [16, 16], strides = [1, 1]} : vector<16x32xf32> to vector<16x16xf32>
    %76 = arith.mulf %74, %31 : vector<16x16xf32>
    %77 = arith.mulf %75, %31 : vector<16x16xf32>
    %78 = arith.mulf %76, %11 : vector<16x16xf32>
    %cst_30 = arith.constant 1.000000e+00 : f32
    %79 = vector.broadcast %cst_30 : f32 to vector<16x16xf32>
    %80 = arith.subf %79, %11 : vector<16x16xf32>
    %81 = arith.addf %78, %80 : vector<16x16xf32>
    %82 = arith.mulf %77, %11 : vector<16x16xf32>
    %cst_31 = arith.constant 1.000000e+00 : f32
    %83 = vector.broadcast %cst_31 : f32 to vector<16x16xf32>
    %84 = arith.subf %83, %11 : vector<16x16xf32>
    %85 = arith.addf %82, %84 : vector<16x16xf32>
    %cst_32 = arith.constant 9.99999971E-10 : f32
    %86 = vector.broadcast %cst_32 : f32 to vector<16x16xf32>
    %87 = arith.addf %81, %86 : vector<16x16xf32>
    %cst_33 = arith.constant 9.99999971E-10 : f32
    %88 = vector.broadcast %cst_33 : f32 to vector<16x16xf32>
    %89 = arith.addf %85, %88 : vector<16x16xf32>
    %90 = arith.divf %87, %89 : vector<16x16xf32>
    %91 = arith.subf %5, %90 : vector<16x16xf32>
    %92 = arith.mulf %91, %91 : vector<16x16xf32>
    %93 = vector.shape_cast %92 : vector<16x16xf32> to vector<1x16x16xf32>
    %cst_34 = arith.constant dense<0.000000e+00> : vector<1xf32>
    %94 = vector.multi_reduction <add>, %93, %cst_34 [1, 2] : vector<1x16x16xf32> to vector<1xf32>
    %95 = vector.shape_cast %94 : vector<1xf32> to vector<1x1x1xf32>
    %96 = vector.extract %95[0, 0, 0] : f32 from vector<1x1x1xf32>
    %cst_35 = arith.constant 2.560000e+02 : f32
    %97 = arith.divf %96, %cst_35 : f32
    %98 = vector.broadcast %97 : f32 to vector<8x128xf32>
    %c0_36 = arith.constant 0 : index
    %c0_37 = arith.constant 0 : index
    %c0_38 = arith.constant 0 : index
    %99 = vector.load %arg6[%c0_36, %c0_37, %c0_38] : memref<1x8x128xf32, #tpu.memory_space<vmem>>, vector<1x8x128xf32>
    %100 = vector.shape_cast %99 : vector<1x8x128xf32> to vector<8x128xf32>
    %101 = vector.shape_cast %98 : vector<8x128xf32> to vector<1x8x128xf32>
    tpu.vector_store %arg6[%c0_36, %c0_37, %c0_38], %101 {strides = array<i32>} : memref<1x8x128xf32, #tpu.memory_space<vmem>>, vector<1x8x128xf32>,
    return
  }
  func.func @transform_0(%arg0: i32) -> (i32, i32, i32, i32) {
    %c0_i32 = arith.constant 0 : i32
    %c0_i32_0 = arith.constant 0 : i32
    %c0_i32_1 = arith.constant 0 : i32
    %c0_i32_2 = arith.constant 0 : i32
    return %arg0, %c0_i32, %c0_i32_0, %c0_i32_1 : i32, i32, i32, i32
  }
  func.func @transform_1(%arg0: i32) -> (i32, i32, i32, i32) {
    %c0_i32 = arith.constant 0 : i32
    %c0_i32_0 = arith.constant 0 : i32
    %c0_i32_1 = arith.constant 0 : i32
    %c0_i32_2 = arith.constant 0 : i32
    return %arg0, %c0_i32, %c0_i32_0, %c0_i32_1 : i32, i32, i32, i32
  }
  func.func @transform_2(%arg0: i32) -> (i32, i32, i32, i32) {
    %c0_i32 = arith.constant 0 : i32
    %c0_i32_0 = arith.constant 0 : i32
    %c0_i32_1 = arith.constant 0 : i32
    %c0_i32_2 = arith.constant 0 : i32
    return %arg0, %c0_i32, %c0_i32_0, %c0_i32_1 : i32, i32, i32, i32
  }
  func.func @transform_3(%arg0: i32) -> (i32, i32) {
    %c0_i32 = arith.constant 0 : i32
    %c0_i32_0 = arith.constant 0 : i32
    %c0_i32_1 = arith.constant 0 : i32
    return %c0_i32, %c0_i32_0 : i32, i32
  }
  func.func @transform_4(%arg0: i32) -> (i32, i32) {
    %c0_i32 = arith.constant 0 : i32
    %c0_i32_0 = arith.constant 0 : i32
    %c0_i32_1 = arith.constant 0 : i32
    return %c0_i32, %c0_i32_0 : i32, i32
  }
  func.func @transform_5(%arg0: i32) -> (i32, i32, i32) {
    %c0_i32 = arith.constant 0 : i32
    %c0_i32_0 = arith.constant 0 : i32
    %c0_i32_1 = arith.constant 0 : i32
    return %arg0, %c0_i32, %c0_i32_0 : i32, i32, i32
  }
}

module attributes {stable_mosaic.version = 11 : i64} {
  func.func @kernel(%arg0: i32, %arg1: memref<1x1x16x16xf32, #tpu.memory_space<vmem>>, %arg2: memref<1x4x16x16xbf16, #tpu.memory_space<vmem>>, %arg3: memref<1x1x16x16xf32, #tpu.memory_space<vmem>>, %arg4: memref<16x16xbf16, #tpu.memory_space<vmem>>, %arg5: memref<16x16xbf16, #tpu.memory_space<vmem>>, %arg6: memref<1x8x128xf32, #tpu.memory_space<vmem>>) attributes {dimension_semantics = [#tpu.dimension_semantics<parallel>], iteration_bounds = array<i64: 2>, scalar_prefetch = 0 : i64, scratch_operands = 0 : i64, tpu.core_type = #tpu.core_type<tc>, window_params = [{transform_indices = @transform_0, window_bounds = array<i64: 1, 1, 16, 16>}, {transform_indices = @transform_1, window_bounds = array<i64: 1, 4, 16, 16>}, {transform_indices = @transform_2, window_bounds = array<i64: 1, 1, 16, 16>}, {pipeline_mode = #tpu.pipeline_mode<synchronous>, transform_indices = @transform_3, window_bounds = array<i64: 16, 16>}, {pipeline_mode = #tpu.pipeline_mode<synchronous>, transform_indices = @transform_4, window_bounds = array<i64: 16, 16>}, {transform_indices = @transform_5, window_bounds = array<i64: 1, 8, 128>}]} {
    %c0 = arith.constant 0 : index
    %c0_0 = arith.constant 0 : index
    %0 = vector.load %arg4[%c0, %c0_0] : memref<16x16xbf16, #tpu.memory_space<vmem>>, vector<16x16xbf16>
    %c0_1 = arith.constant 0 : index
    %c0_2 = arith.constant 0 : index
    %1 = vector.load %arg5[%c0_1, %c0_2] : memref<16x16xbf16, #tpu.memory_space<vmem>>, vector<16x16xbf16>
    %c0_3 = arith.constant 0 : index
    %c0_4 = arith.constant 0 : index
    %c0_5 = arith.constant 0 : index
    %c0_6 = arith.constant 0 : index
    %2 = vector.load %arg1[%c0_3, %c0_4, %c0_5, %c0_6] : memref<1x1x16x16xf32, #tpu.memory_space<vmem>>, vector<1x1x16x16xf32>
    %3 = vector.shape_cast %2 : vector<1x1x16x16xf32> to vector<16x16xf32>
    %c0_7 = arith.constant 0 : index
    %c0_8 = arith.constant 0 : index
    %c0_9 = arith.constant 0 : index
    %c0_10 = arith.constant 0 : index
    %4 = vector.load %arg3[%c0_7, %c0_8, %c0_9, %c0_10] : memref<1x1x16x16xf32, #tpu.memory_space<vmem>>, vector<1x1x16x16xf32>
    %5 = vector.shape_cast %4 : vector<1x1x16x16xf32> to vector<16x16xf32>
    %6 = arith.mulf %5, %5 : vector<16x16xf32>
    %cst = arith.constant 1.000000e-01 : f32
    %7 = vector.broadcast %cst : f32 to vector<16x16xf32>
    %8 = arith.cmpf ogt, %3, %7 : vector<16x16xf32>
    %cst_11 = arith.constant 1.000000e+00 : f32
    %cst_12 = arith.constant 0.000000e+00 : f32
    %9 = vector.broadcast %cst_11 : f32 to vector<16x16xf32>
    %10 = vector.broadcast %cst_12 : f32 to vector<16x16xf32>
    %11 = arith.select %8, %9, %10 : vector<16x16xi1>, vector<16x16xf32>
    %12 = arith.truncf %11 : vector<16x16xf32> to vector<16x16xbf16>
    %13 = arith.truncf %5 : vector<16x16xf32> to vector<16x16xbf16>
    %14 = arith.truncf %6 : vector<16x16xf32> to vector<16x16xbf16>
    %15 = tpu.concatenate %12, %13, %14 in 0 : vector<16x16xbf16>, vector<16x16xbf16>, vector<16x16xbf16> -> vector<48x16xbf16>
    %cst_13 = arith.constant dense<0.000000e+00> : vector<48x16xf32>
    %16 = tpu.matmul %15, %1, %cst_13 {dimension_numbers = #tpu.dot_dimension_numbers<[1], [0], [0], [1], [0, 0, 1, 1], [], []>} : vector<48x16xbf16>, vector<16x16xbf16>, vector<48x16xf32> -> vector<48x16xf32>
    %17 = vector.extract_strided_slice %16 {offsets = [0, 0], sizes = [16, 16], strides = [1, 1]} : vector<48x16xf32> to vector<16x16xf32>
    %18 = arith.truncf %17 : vector<16x16xf32> to vector<16x16xbf16>
    %19 = vector.extract_strided_slice %16 {offsets = [16, 0], sizes = [16, 16], strides = [1, 1]} : vector<48x16xf32> to vector<16x16xf32>
    %20 = arith.truncf %19 : vector<16x16xf32> to vector<16x16xbf16>
    %21 = vector.extract_strided_slice %16 {offsets = [32, 0], sizes = [16, 16], strides = [1, 1]} : vector<48x16xf32> to vector<16x16xf32>
    %22 = arith.truncf %21 : vector<16x16xf32> to vector<16x16xbf16>
    %23 = tpu.concatenate %18, %20, %22 in 1 : vector<16x16xbf16>, vector<16x16xbf16>, vector<16x16xbf16> -> vector<16x48xbf16>
    %cst_14 = arith.constant dense<0.000000e+00> : vector<16x48xf32>
    %24 = tpu.matmul %0, %23, %cst_14 {dimension_numbers = #tpu.dot_dimension_numbers<[1], [0], [0], [1], [0, 0, 1, 1], [], []>} : vector<16x16xbf16>, vector<16x48xbf16>, vector<16x48xf32> -> vector<16x48xf32>
    %25 = vector.extract_strided_slice %24 {offsets = [0, 0], sizes = [16, 16], strides = [1, 1]} : vector<16x48xf32> to vector<16x16xf32>
    %26 = vector.extract_strided_slice %24 {offsets = [0, 16], sizes = [16, 16], strides = [1, 1]} : vector<16x48xf32> to vector<16x16xf32>
    %27 = vector.extract_strided_slice %24 {offsets = [0, 32], sizes = [16, 16], strides = [1, 1]} : vector<16x48xf32> to vector<16x16xf32>
    %cst_15 = arith.constant 9.99999997E-7 : f32
    %28 = vector.broadcast %cst_15 : f32 to vector<16x16xf32>
    %29 = arith.addf %25, %28 : vector<16x16xf32>
    %cst_16 = arith.constant 1.000000e+00 : f32
    %30 = vector.broadcast %cst_16 : f32 to vector<16x16xf32>
    %31 = arith.divf %30, %29 : vector<16x16xf32>
    %32 = arith.mulf %26, %31 : vector<16x16xf32>
    %33 = arith.mulf %27, %31 : vector<16x16xf32>
    %34 = arith.mulf %32, %3 : vector<16x16xf32>
    %c0_17 = arith.constant 0 : index
    %c0_18 = arith.constant 0 : index
    %c0_19 = arith.constant 0 : index
    %c0_20 = arith.constant 0 : index
    %35 = vector.load %arg2[%c0_17, %c0_18, %c0_19, %c0_20] : memref<1x4x16x16xbf16, #tpu.memory_space<vmem>>, vector<1x4x16x16xbf16>
    %36 = vector.shape_cast %35 : vector<1x4x16x16xbf16> to vector<4x16x16xbf16>
    %37 = arith.extf %36 : vector<4x16x16xbf16> to vector<4x16x16xf32>
    %38 = arith.mulf %37, %37 : vector<4x16x16xf32>
    %39 = vector.shape_cast %34 : vector<16x16xf32> to vector<1x16x16xf32>
    %40 = vector.broadcast %39 : vector<1x16x16xf32> to vector<4x16x16xf32>
    %41 = arith.mulf %38, %40 : vector<4x16x16xf32>
    %cst_21 = arith.constant dense<0.000000e+00> : vector<4x16xf32>
    %42 = vector.multi_reduction <add>, %41, %cst_21 [2] : vector<4x16x16xf32> to vector<4x16xf32>
    %43 = vector.shape_cast %42 : vector<4x16xf32> to vector<4x16x1xf32>
    %cst_22 = arith.constant dense<0.000000e+00> : vector<4x1xf32>
    %44 = vector.multi_reduction <add>, %43, %cst_22 [1] : vector<4x16x1xf32> to vector<4x1xf32>
    %45 = vector.shape_cast %44 : vector<4x1xf32> to vector<4x1x1xf32>
    %46 = vector.shape_cast %33 : vector<16x16xf32> to vector<1x16x16xf32>
    %47 = vector.broadcast %46 : vector<1x16x16xf32> to vector<4x16x16xf32>
    %48 = arith.mulf %38, %47 : vector<4x16x16xf32>
    %cst_23 = arith.constant dense<0.000000e+00> : vector<4x16xf32>
    %49 = vector.multi_reduction <add>, %48, %cst_23 [2] : vector<4x16x16xf32> to vector<4x16xf32>
    %50 = vector.shape_cast %49 : vector<4x16xf32> to vector<4x16x1xf32>
    %cst_24 = arith.constant dense<0.000000e+00> : vector<4x1xf32>
    %51 = vector.multi_reduction <add>, %50, %cst_24 [1] : vector<4x16x1xf32> to vector<4x1xf32>
    %52 = vector.shape_cast %51 : vector<4x1xf32> to vector<4x1x1xf32>
    %cst_25 = arith.constant 9.99999997E-7 : f32
    %53 = vector.broadcast %cst_25 : f32 to vector<4x1x1xf32>
    %54 = arith.addf %52, %53 : vector<4x1x1xf32>
    %55 = arith.divf %45, %54 : vector<4x1x1xf32>
    %56 = vector.broadcast %55 : vector<4x1x1xf32> to vector<4x16x16xf32>
    %57 = arith.mulf %56, %38 : vector<4x16x16xf32>
    %cst_26 = arith.constant dense<0.000000e+00> : vector<16x16xf32>
    %58 = vector.multi_reduction <add>, %57, %cst_26 [0] : vector<4x16x16xf32> to vector<16x16xf32>
    %59 = arith.mulf %58, %3 : vector<16x16xf32>
    %60 = arith.mulf %55, %55 : vector<4x1x1xf32>
    %61 = vector.broadcast %60 : vector<4x1x1xf32> to vector<4x16x16xf32>
    %62 = arith.mulf %61, %38 : vector<4x16x16xf32>
    %cst_27 = arith.constant dense<0.000000e+00> : vector<16x16xf32>
    %63 = vector.multi_reduction <add>, %62, %cst_27 [0] : vector<4x16x16xf32> to vector<16x16xf32>
    %64 = arith.truncf %59 : vector<16x16xf32> to vector<16x16xbf16>
    %65 = arith.truncf %63 : vector<16x16xf32> to vector<16x16xbf16>
    %66 = tpu.concatenate %64, %65 in 0 : vector<16x16xbf16>, vector<16x16xbf16> -> vector<32x16xbf16>
    %cst_28 = arith.constant dense<0.000000e+00> : vector<32x16xf32>
    %67 = tpu.matmul %66, %1, %cst_28 {dimension_numbers = #tpu.dot_dimension_numbers<[1], [0], [0], [1], [0, 0, 1, 1], [], []>} : vector<32x16xbf16>, vector<16x16xbf16>, vector<32x16xf32> -> vector<32x16xf32>
    %68 = vector.extract_strided_slice %67 {offsets = [0, 0], sizes = [16, 16], strides = [1, 1]} : vector<32x16xf32> to vector<16x16xf32>
    %69 = arith.truncf %68 : vector<16x16xf32> to vector<16x16xbf16>
    %70 = vector.extract_strided_slice %67 {offsets = [16, 0], sizes = [16, 16], strides = [1, 1]} : vector<32x16xf32> to vector<16x16xf32>
    %71 = arith.truncf %70 : vector<16x16xf32> to vector<16x16xbf16>
    %72 = tpu.concatenate %69, %71 in 1 : vector<16x16xbf16>, vector<16x16xbf16> -> vector<16x32xbf16>
    %cst_29 = arith.constant dense<0.000000e+00> : vector<16x32xf32>
    %73 = tpu.matmul %0, %72, %cst_29 {dimension_numbers = #tpu.dot_dimension_numbers<[1], [0], [0], [1], [0, 0, 1, 1], [], []>} : vector<16x16xbf16>, vector<16x32xbf16>, vector<16x32xf32> -> vector<16x32xf32>
    %74 = vector.extract_strided_slice %73 {offsets = [0, 0], sizes = [16, 16], strides = [1, 1]} : vector<16x32xf32> to vector<16x16xf32>
    %75 = vector.extract_strided_slice %73 {offsets = [0, 16], sizes = [16, 16], strides = [1, 1]} : vector<16x32xf32> to vector<16x16xf32>
    %76 = arith.mulf %74, %31 : vector<16x16xf32>
    %77 = arith.mulf %75, %31 : vector<16x16xf32>
    %78 = arith.mulf %76, %11 : vector<16x16xf32>
    %cst_30 = arith.constant 1.000000e+00 : f32
    %79 = vector.broadcast %cst_30 : f32 to vector<16x16xf32>
    %80 = arith.subf %79, %11 : vector<16x16xf32>
    %81 = arith.addf %78, %80 : vector<16x16xf32>
    %82 = arith.mulf %77, %11 : vector<16x16xf32>
    %cst_31 = arith.constant 1.000000e+00 : f32
    %83 = vector.broadcast %cst_31 : f32 to vector<16x16xf32>
    %84 = arith.subf %83, %11 : vector<16x16xf32>
    %85 = arith.addf %82, %84 : vector<16x16xf32>
    %cst_32 = arith.constant 9.99999971E-10 : f32
    %86 = vector.broadcast %cst_32 : f32 to vector<16x16xf32>
    %87 = arith.addf %81, %86 : vector<16x16xf32>
    %cst_33 = arith.constant 9.99999971E-10 : f32
    %88 = vector.broadcast %cst_33 : f32 to vector<16x16xf32>
    %89 = arith.addf %85, %88 : vector<16x16xf32>
    %90 = arith.divf %87, %89 : vector<16x16xf32>
    %91 = arith.subf %5, %90 : vector<16x16xf32>
    %92 = arith.mulf %91, %91 : vector<16x16xf32>
    %93 = vector.shape_cast %92 : vector<16x16xf32> to vector<1x16x16xf32>
    %cst_34 = arith.constant dense<0.000000e+00> : vector<1xf32>
    %94 = vector.multi_reduction <add>, %93, %cst_34 [1, 2] : vector<1x16x16xf32> to vector<1xf32>
    %95 = vector.shape_cast %94 : vector<1xf32> to vector<1x1x1xf32>
    %96 = vector.extract %95[0, 0, 0] : f32 from vector<1x1x1xf32>
    %cst_35 = arith.constant 2.560000e+02 : f32
    %97 = arith.divf %96, %cst_35 : f32
    %98 = vector.broadcast %97 : f32 to vector<8x128xf32>
    %c0_36 = arith.constant 0 : index
    %c0_37 = arith.constant 0 : index
    %c0_38 = arith.constant 0 : index
    %99 = vector.load %arg6[%c0_36, %c0_37, %c0_38] : memref<1x8x128xf32, #tpu.memory_space<vmem>>, vector<1x8x128xf32>
    %100 = vector.shape_cast %99 : vector<1x8x128xf32> to vector<8x128xf32>
    %101 = vector.shape_cast %98 : vector<8x128xf32> to vector<1x8x128xf32>
    tpu.vector_store %arg6[%c0_36, %c0_37, %c0_38], %101 {strides = array<i32>} : memref<1x8x128xf32, #tpu.memory_space<vmem>>, vector<1x8x128xf32>,
    return
  }
  func.func @transform_0(%arg0: i32) -> (i32, i32, i32, i32) {
    %c0_i32 = arith.constant 0 : i32
    %c0_i32_0 = arith.constant 0 : i32
    %c0_i32_1 = arith.constant 0 : i32
    %c0_i32_2 = arith.constant 0 : i32
    return %arg0, %c0_i32, %c0_i32_0, %c0_i32_1 : i32, i32, i32, i32
  }
  func.func @transform_1(%arg0: i32) -> (i32, i32, i32, i32) {
    %c0_i32 = arith.constant 0 : i32
    %c0_i32_0 = arith.constant 0 : i32
    %c0_i32_1 = arith.constant 0 : i32
    %c0_i32_2 = arith.constant 0 : i32
    return %arg0, %c0_i32, %c0_i32_0, %c0_i32_1 : i32, i32, i32, i32
  }
  func.func @transform_2(%arg0: i32) -> (i32, i32, i32, i32) {
    %c0_i32 = arith.constant 0 : i32
    %c0_i32_0 = arith.constant 0 : i32
    %c0_i32_1 = arith.constant 0 : i32
    %c0_i32_2 = arith.constant 0 : i32
    return %arg0, %c0_i32, %c0_i32_0, %c0_i32_1 : i32, i32, i32, i32
  }
  func.func @transform_3(%arg0: i32) -> (i32, i32) {
    %c0_i32 = arith.constant 0 : i32
    %c0_i32_0 = arith.constant 0 : i32
    %c0_i32_1 = arith.constant 0 : i32
    return %c0_i32, %c0_i32_0 : i32, i32
  }
  func.func @transform_4(%arg0: i32) -> (i32, i32) {
    %c0_i32 = arith.constant 0 : i32
    %c0_i32_0 = arith.constant 0 : i32
    %c0_i32_1 = arith.constant 0 : i32
    return %c0_i32, %c0_i32_0 : i32, i32
  }
  func.func @transform_5(%arg0: i32) -> (i32, i32, i32) {
    %c0_i32 = arith.constant 0 : i32
    %c0_i32_0 = arith.constant 0 : i32
    %c0_i32_1 = arith.constant 0 : i32
    return %arg0, %c0_i32, %c0_i32_0 : i32, i32, i32
  }
}

</mosaic_0001>

<llo_original>
// kernel: tpu_custom_call.1
$region0: #{tpu_custom_call.1}
  #allocation0 [shape = 'u32[]', space=smem, size = 0x4, offset = 0x4, fixed_abs, tag = 'smem constant byte address 0x4 - core index']
  #allocation1 [shape = 'u32[144,128]{1,0:T(1,128)}', space=vmem, size = 0x12000, scoped, tag = 'internal scratch']
  %s0 = inlined_call_operand.hbm [shape: f32[2,1,16,16], index: 0, kind: input, shape index: {}]
  %s1 = inlined_call_operand.hbm [shape: bf16[2,4,16,16], index: 1, kind: input, shape index: {}]
  %s2 = inlined_call_operand.hbm [shape: f32[2,1,16,16], index: 2, kind: input, shape index: {}]
  %s3 = inlined_call_operand.vmem [shape: bf16[16,16], index: 3, kind: input, shape index: {}]
  %s4 = inlined_call_operand.hbm [shape: bf16[16,16], index: 4, kind: input, shape index: {}]
  %s5 = inlined_call_operand.hbm [shape: f32[2,8,128], index: 5, kind: output, shape index: {}]
  %s6 = sld [smem:[#allocation0]]
  $region69: #{tpu_custom_call.1} parent=0
    _
  %s8 = ssub.s32 1, %s6
  %s9 = scalar_select 0, %s8, %s6
  $region1: #{tpu_custom_call.1} parent=0
    #allocation2 [shape = 'u8[16384]{0}', space=vmem, size = 0x4000, scoped, tag = 'input window, operand 0']
    #allocation3 [shape = 's32[2]{0}', space=sflag, size = 0x8, scoped, tag = 'scoped memory for tpu_custom_call.1']
    #allocation4 [shape = 's32[2]{0}', space=sflag, size = 0x8, scoped, tag = 'scoped memory for tpu_custom_call.1']
    #allocation5 [shape = 'u8[32768]{0}', space=vmem, size = 0x8000, scoped, tag = 'input window, operand 1']
    #allocation6 [shape = 's32[2]{0}', space=sflag, size = 0x8, scoped, tag = 'scoped memory for tpu_custom_call.1']
    #allocation7 [shape = 'u8[16384]{0}', space=vmem, size = 0x4000, scoped, tag = 'input window, operand 2']
    #allocation8 [shape = 'u8[4096]{0}', space=vmem, size = 0x1000, scoped, tag = 'input window, operand 4, single buffered']
    #allocation9 [shape = 's32[1]{0}', space=sflag, size = 0x4, scoped, tag = 'scoped memory for tpu_custom_call.1']
    #allocation10 [shape = 'u8[8192]{0}', space=vmem, size = 0x2000, scoped, tag = 'output window, operand 0']
    %10 = vsyncpa [#allocation3], 0
    %s11 = scalar_lea.sflag [#allocation3], 1
    %12 = vsyncpa %s11, 0
    %13 = vsyncpa [#allocation6], 0
    %s14 = scalar_lea.sflag [#allocation6], 1
    %15 = vsyncpa %s14, 0
    %16 = vsyncpa [#allocation9], 0
    %17 = vsyncpa [#allocation4], 0
    %s18 = scalar_lea.sflag [#allocation4], 1
    %19 = vsyncpa %s18, 0
    loop: start=0, step=1, limit=4
    $region2: #{tpu_custom_call.1} parent=1 // loop_pre_header
      _
    $region3: #{tpu_custom_call.1} parent=1 // loop_header
      %s21 = sphi 0, %s25
      %p22 = scmp.ge.s32.totalorder %s21, 4
      %s31 = sphi 0, %s33
      %s34 = sphi 0, %s31
      %s35 = sphi 0, %s34
      %s51 = sphi 0, %s35
      %s57 = sphi 0, %s59
      %s60 = sphi 0, %s57
      %s61 = sphi 0, %s60
      %s77 = sphi 0, %s61
      %s83 = sphi 0, %s85
      %s86 = sphi 0, %s83
      %s87 = sphi 0, %s86
      %s103 = sphi 0, %s87
      %s107 = sphi 0, %s107
      %s109 = sphi 0, %s107
      %s110 = sphi 0, %s109
      %s124 = sphi 0, %s110
      %s128 = sphi 0, %s128
      %s130 = sphi 0, %s128
      %s131 = sphi 0, %s130
      %s145 = sphi 0, %s131
      %s151 = sphi 0, %s153
      %s154 = sphi 0, %s151
      %s155 = sphi 0, %s154
      %s171 = sphi 0, %s155
    $region4: #{tpu_custom_call.1} parent=1 // loop_header_branch
      %24 = sbr.rel (%p22) target = $region8
    $region5: #{tpu_custom_call.1} parent=1 // loop_body
      %s26 = ssub.s32 %s21, 1
      %s27 = ssub.s32 %s21, 2
      %s28 = sadd.s32 %s21, 1
      %s29 = ssub.s32 %s21, %s28
      %p30 = scmp.eq.s32.totalorder %s29, 0
      %s32 = sadd.s32 %s31, 1
      %s33 = scalar_select %p30, %s31, %s32
      %p36 = pneg %p30
      %p37 = scmp.eq.s32.totalorder %s21, 1
      %p38 = por %p36, %p37
      %p39 = scmp.ne.s32.totalorder %s31, %s34
      %p40 = scmp.eq.s32.totalorder %s21, 0
      %p41 = por %p39, %p40
      %p42 = scmp.ne.s32.totalorder %s31, %s34
      %p43 = scmp.eq.s32.totalorder %s26, 1
      %p44 = por %p42, %p43
      %p45 = scmp.ne.s32.totalorder %s34, %s35
      %p46 = scmp.eq.s32.totalorder %s26, 0
      %p47 = por %p45, %p46
      %p48 = scmp.ne.s32.totalorder %s34, %s35
      %p49 = scmp.eq.s32.totalorder %s27, 1
      %p50 = por %p48, %p49
      %p52 = scmp.ne.s32.totalorder %s35, %s51
      %p53 = scmp.eq.s32.totalorder %s27, 0
      %p54 = por %p52, %p53
      %s55 = ssub.s32 %s21, %s28
      %p56 = scmp.eq.s32.totalorder %s55, 0
      %s58 = sadd.s32 %s57, 1
      %s59 = scalar_select %p56, %s57, %s58
      %p62 = pneg %p56
      %p63 = scmp.eq.s32.totalorder %s21, 1
      %p64 = por %p62, %p63
      %p65 = scmp.ne.s32.totalorder %s57, %s60
      %p66 = scmp.eq.s32.totalorder %s21, 0
      %p67 = por %p65, %p66
      %p68 = scmp.ne.s32.totalorder %s57, %s60
      %p69 = scmp.eq.s32.totalorder %s26, 1
      %p70 = por %p68, %p69
      %p71 = scmp.ne.s32.totalorder %s60, %s61
      %p72 = scmp.eq.s32.totalorder %s26, 0
      %p73 = por %p71, %p72
      %p74 = scmp.ne.s32.totalorder %s60, %s61
      %p75 = scmp.eq.s32.totalorder %s27, 1
      %p76 = por %p74, %p75
      %p78 = scmp.ne.s32.totalorder %s61, %s77
      %p79 = scmp.eq.s32.totalorder %s27, 0
      %p80 = por %p78, %p79
      %s81 = ssub.s32 %s21, %s28
      %p82 = scmp.eq.s32.totalorder %s81, 0
      %s84 = sadd.s32 %s83, 1
      %s85 = scalar_select %p82, %s83, %s84
      %p88 = pneg %p82
      %p89 = scmp.eq.s32.totalorder %s21, 1
      %p90 = por %p88, %p89
      %p91 = scmp.ne.s32.totalorder %s83, %s86
      %p92 = scmp.eq.s32.totalorder %s21, 0
      %p93 = por %p91, %p92
      %p94 = scmp.ne.s32.totalorder %s83, %s86
      %p95 = scmp.eq.s32.totalorder %s26, 1
      %p96 = por %p94, %p95
      %p97 = scmp.ne.s32.totalorder %s86, %s87
      %p98 = scmp.eq.s32.totalorder %s26, 0
      %p99 = por %p97, %p98
      %p100 = scmp.ne.s32.totalorder %s86, %s87
      %p101 = scmp.eq.s32.totalorder %s27, 1
      %p102 = por %p100, %p101
      %p104 = scmp.ne.s32.totalorder %s87, %s103
      %p105 = scmp.eq.s32.totalorder %s27, 0
      %p106 = por %p104, %p105
      %s108 = sadd.s32 %s107, 1
      %p111 = scmp.eq.s32.totalorder %s21, 1
      %p112 = scmp.ne.s32.totalorder %s107, %s109
      %p113 = scmp.eq.s32.totalorder %s21, 0
      %p114 = por %p112, %p113
      %p115 = scmp.ne.s32.totalorder %s107, %s109
      %p116 = scmp.eq.s32.totalorder %s26, 1
      %p117 = por %p115, %p116
      %p118 = scmp.ne.s32.totalorder %s109, %s110
      %p119 = scmp.eq.s32.totalorder %s26, 0
      %p120 = por %p118, %p119
      %p121 = scmp.ne.s32.totalorder %s109, %s110
      %p122 = scmp.eq.s32.totalorder %s27, 1
      %p123 = por %p121, %p122
      %p125 = scmp.ne.s32.totalorder %s110, %s124
      %p126 = scmp.eq.s32.totalorder %s27, 0
      %p127 = por %p125, %p126
      %s129 = sadd.s32 %s128, 1
      %p132 = scmp.eq.s32.totalorder %s21, 1
      %p133 = scmp.ne.s32.totalorder %s128, %s130
      %p134 = scmp.eq.s32.totalorder %s21, 0
      %p135 = por %p133, %p134
      %p136 = scmp.ne.s32.totalorder %s128, %s130
      %p137 = scmp.eq.s32.totalorder %s26, 1
      %p138 = por %p136, %p137
      %p139 = scmp.ne.s32.totalorder %s130, %s131
      %p140 = scmp.eq.s32.totalorder %s26, 0
      %p141 = por %p139, %p140
      %p142 = scmp.ne.s32.totalorder %s130, %s131
      %p143 = scmp.eq.s32.totalorder %s27, 1
      %p144 = por %p142, %p143
      %p146 = scmp.ne.s32.totalorder %s131, %s145
      %p147 = scmp.eq.s32.totalorder %s27, 0
      %p148 = por %p146, %p147
      %s149 = ssub.s32 %s21, %s28
      %p150 = scmp.eq.s32.totalorder %s149, 0
      %s152 = sadd.s32 %s151, 1
      %s153 = scalar_select %p150, %s151, %s152
      %p156 = pneg %p150
      %p157 = scmp.eq.s32.totalorder %s21, 1
      %p158 = por %p156, %p157
      %p159 = scmp.ne.s32.totalorder %s151, %s154
      %p160 = scmp.eq.s32.totalorder %s21, 0
      %p161 = por %p159, %p160
      %p162 = scmp.ne.s32.totalorder %s151, %s154
      %p163 = scmp.eq.s32.totalorder %s26, 1
      %p164 = por %p162, %p163
      %p165 = scmp.ne.s32.totalorder %s154, %s155
      %p166 = scmp.eq.s32.totalorder %s26, 0
      %p167 = por %p165, %p166
      %p168 = scmp.ne.s32.totalorder %s154, %s155
      %p169 = scmp.eq.s32.totalorder %s27, 1
      %p170 = por %p168, %p169
      %p172 = scmp.ne.s32.totalorder %s155, %s171
      %p173 = scmp.eq.s32.totalorder %s27, 0
      %p174 = por %p172, %p173
      %p175 = scmp.le.s32.totalorder 1, %s21
      %p176 = scmp.lt.s32.totalorder %s21, 3
      %p177 = pnand %p175, %p176
      %p178 = pneg %p177
      // Predicated region
      $region9: #{tpu_custom_call.1} parent=5 // pred_check
        _
      $region10: #{tpu_custom_call.1} parent=5 // pred_check_branch
        %180 = sbr.rel (%p177) target = $region12
      $region11: #{tpu_custom_call.1} parent=5 // pred_region
        %s181 = ssub.s32 %s21, 1
        // Predicated region
        $region13: #{tpu_custom_call.1} parent=11 // pred_check
          %p182 = pneg %p120
        $region14: #{tpu_custom_call.1} parent=11 // pred_check_branch
          %184 = sbr.rel (%p182) target = $region16
        $region15: #{tpu_custom_call.1} parent=11 // pred_region
          _
        $region16: #{tpu_custom_call.1} parent=11 // pred_fallthru
          _
        // Predicated region
        $region17: #{tpu_custom_call.1} parent=11 // pred_check
          %p185 = pneg %p141
        $region18: #{tpu_custom_call.1} parent=11 // pred_check_branch
          %187 = sbr.rel (%p185) target = $region20
        $region19: #{tpu_custom_call.1} parent=11 // pred_region
          %s189 = ssub.s32 128, 128
          %190 = vsyncadd [#allocation9], %s189
          %s191 = sshll.u32 [#allocation8], 4
          %s192 = int_to_ptr.vmem [resolvable:$true] %s191
          %197 = dma.hbm_to_vmem [thread:$0]  %s4, 128, %s192, [#allocation9], 64, 64, 4
        $region20: #{tpu_custom_call.1} parent=11 // pred_fallthru
          _
      $region12: #{tpu_custom_call.1} parent=5 // pred_fallthru
        _
      %p198 = scmp.lt.s32.totalorder %s21, 2
      // Predicated region
      $region21: #{tpu_custom_call.1} parent=5 // pred_check
        %p199 = pneg %p198
      $region22: #{tpu_custom_call.1} parent=5 // pred_check_branch
        %201 = sbr.rel (%p199) target = $region24
      $region23: #{tpu_custom_call.1} parent=5 // pred_region
        // Predicated region
        $region25: #{tpu_custom_call.1} parent=23 // pred_check
          %p202 = pneg %p41
        $region26: #{tpu_custom_call.1} parent=23 // pred_check_branch
          %204 = sbr.rel (%p202) target = $region28
        $region27: #{tpu_custom_call.1} parent=23 // pred_region
          %s205 = sand.u32 %s31, 1
          %s206 = scalar_lea.sflag [#allocation3], %s205
          %s207 = sand.u32 %s31, 1
          %s208 = smul.addr %s207, 16
          %s209 = scalar_lea.vmem [#allocation2], %s208
          %s211 = ssub.s32 256, 256
          %212 = vsyncadd %s206, %s211
          %s213 = smul.addr %s21, 2
          %s214 = smul.addr %s213, 128
          %s215 = scalar_lea.hbm %s0, %s214
          %s216 = sshll.u32 %s209, 4
          %s217 = int_to_ptr.vmem [resolvable:$true] %s216
          %222 = dma.hbm_to_vmem [thread:$0]  %s215, 256, %s217, %s206, 128, 128, 8
        $region28: #{tpu_custom_call.1} parent=23 // pred_fallthru
          _
        // Predicated region
        $region29: #{tpu_custom_call.1} parent=23 // pred_check
          %p223 = pneg %p67
        $region30: #{tpu_custom_call.1} parent=23 // pred_check_branch
          %225 = sbr.rel (%p223) target = $region32
        $region31: #{tpu_custom_call.1} parent=23 // pred_region
          %s226 = sand.u32 %s21, 1
          %s227 = scalar_lea.sflag [#allocation6], %s226
          %s228 = sand.u32 %s57, 1
          %s229 = smul.addr %s228, 32
          %s230 = scalar_lea.vmem [#allocation5], %s229
          %s232 = ssub.s32 512, 512
          %233 = vsyncadd %s227, %s232
          %s234 = smul.addr %s21, 8
          %s235 = smul.addr %s234, 64
          %s236 = scalar_lea.hbm %s1, %s235
          %s237 = sshll.u32 %s230, 4
          %s238 = int_to_ptr.vmem [resolvable:$true] %s237
          %243 = dma.hbm_to_vmem [thread:$0]  %s236, 512, %s238, %s227, 64, 64, 4
        $region32: #{tpu_custom_call.1} parent=23 // pred_fallthru
          _
        // Predicated region
        $region33: #{tpu_custom_call.1} parent=23 // pred_check
          %p244 = pneg %p93
        $region34: #{tpu_custom_call.1} parent=23 // pred_check_branch
          %246 = sbr.rel (%p244) target = $region36
        $region35: #{tpu_custom_call.1} parent=23 // pred_region
          %s247 = sand.u32 %s21, 1
          %s248 = scalar_lea.sflag [#allocation6], %s247
          %s249 = sand.u32 %s83, 1
          %s250 = smul.addr %s249, 16
          %s251 = scalar_lea.vmem [#allocation7], %s250
          %s253 = ssub.s32 256, 256
          %254 = vsyncadd %s248, %s253
          %s255 = smul.addr %s21, 2
          %s256 = smul.addr %s255, 128
          %s257 = scalar_lea.hbm %s2, %s256
          %s258 = sshll.u32 %s251, 4
          %s259 = int_to_ptr.vmem [resolvable:$true] %s258
          %264 = dma.hbm_to_vmem [thread:$0]  %s257, 256, %s259, %s248, 128, 128, 8
        $region36: #{tpu_custom_call.1} parent=23 // pred_fallthru
          _
      $region24: #{tpu_custom_call.1} parent=5 // pred_fallthru
        _
      %p265 = scmp.le.s32.totalorder 1, %s21
      %p266 = scmp.lt.s32.totalorder %s21, 3
      %p267 = pnand %p265, %p266
      %p268 = pneg %p267
      // Predicated region
      $region37: #{tpu_custom_call.1} parent=5 // pred_check
        _
      $region38: #{tpu_custom_call.1} parent=5 // pred_check_branch
        %270 = sbr.rel (%p267) target = $region40
      $region39: #{tpu_custom_call.1} parent=5 // pred_region
        %s271 = ssub.s32 %s21, 1
        %s272 = sand.u32 %s34, 1
        %s273 = scalar_lea.sflag [#allocation3], %s272
        %s274 = sand.u32 %s34, 1
        %s275 = smul.addr %s274, 16
        %s276 = scalar_lea.vmem [#allocation2], %s275
        // Predicated region
        $region41: #{tpu_custom_call.1} parent=39 // pred_check
          %p277 = pneg %p47
        $region42: #{tpu_custom_call.1} parent=39 // pred_check_branch
          %279 = sbr.rel (%p277) target = $region44
        $region43: #{tpu_custom_call.1} parent=39 // pred_region
          %280 = dma.done %s273, 256
        $region44: #{tpu_custom_call.1} parent=39 // pred_fallthru
          _
        %s281 = sand.u32 %s26, 1
        %s282 = scalar_lea.sflag [#allocation6], %s281
        %s283 = sand.u32 %s60, 1
        %s284 = smul.addr %s283, 32
        %s285 = scalar_lea.vmem [#allocation5], %s284
        // Predicated region
        $region45: #{tpu_custom_call.1} parent=39 // pred_check
          %p286 = pneg %p73
        $region46: #{tpu_custom_call.1} parent=39 // pred_check_branch
          %288 = sbr.rel (%p286) target = $region48
        $region47: #{tpu_custom_call.1} parent=39 // pred_region
          %289 = dma.done %s282, 512
        $region48: #{tpu_custom_call.1} parent=39 // pred_fallthru
          _
        %s290 = sand.u32 %s26, 1
        %s291 = scalar_lea.sflag [#allocation6], %s290
        %s292 = sand.u32 %s86, 1
        %s293 = smul.addr %s292, 16
        %s294 = scalar_lea.vmem [#allocation7], %s293
        // Predicated region
        $region49: #{tpu_custom_call.1} parent=39 // pred_check
          %p295 = pneg %p99
        $region50: #{tpu_custom_call.1} parent=39 // pred_check_branch
          %297 = sbr.rel (%p295) target = $region52
        $region51: #{tpu_custom_call.1} parent=39 // pred_region
          %298 = dma.done %s291, 256
        $region52: #{tpu_custom_call.1} parent=39 // pred_fallthru
          _
        // Predicated region
        $region53: #{tpu_custom_call.1} parent=39 // pred_check
          %p299 = pneg %p141
        $region54: #{tpu_custom_call.1} parent=39 // pred_check_branch
          %301 = sbr.rel (%p299) target = $region56
        $region55: #{tpu_custom_call.1} parent=39 // pred_region
          %302 = dma.done [#allocation9], 128
        $region56: #{tpu_custom_call.1} parent=39 // pred_fallthru
          _
        %s303 = sand.u32 %s34, 1
        %s304 = scalar_lea.sflag [#allocation3], %s303
        %s305 = sand.u32 %s34, 1
        %s306 = smul.addr %s305, 16
        %s307 = scalar_lea.vmem [#allocation2], %s306
        %p308 = pneg %p47
        %p309 = pneg %p44
        %s310 = sand.u32 %s26, 1
        %s311 = scalar_lea.sflag [#allocation6], %s310
        %s312 = sand.u32 %s60, 1
        %s313 = smul.addr %s312, 32
        %s314 = scalar_lea.vmem [#allocation5], %s313
        %p315 = pneg %p73
        %p316 = pneg %p70
        %s317 = sand.u32 %s26, 1
        %s318 = scalar_lea.sflag [#allocation6], %s317
        %s319 = sand.u32 %s86, 1
        %s320 = smul.addr %s319, 16
        %s321 = scalar_lea.vmem [#allocation7], %s320
        %p322 = pneg %p99
        %p323 = pneg %p96
        %p324 = pneg %p120
        %p325 = pneg %p117
        %p326 = pneg %p141
        %p327 = pneg %p138
        %p328 = pneg %p167
        %p329 = pneg %p164
        %s330 = sand.u32 %s154, 1
        %s331 = scalar_lea.sflag [#allocation4], %s330
        %s332 = sand.u32 %s154, 1
        %s333 = smul.addr %s332, 8
        %s334 = scalar_lea.vmem [#allocation10], %s333
        %v336 = vld [vmem:[%s3] sm:$0xf]
        %v337 = vld [vmem:[%s3 + $0x4] sm:$0xf]
        %v338 = vld [vmem:[#allocation8] sm:$0xf]
        %v339 = vld [vmem:[#allocation8 + $0x4] sm:$0xf]
        %v340 = vld [vmem:[%s276] sm:$0xff]
        %v341 = vld [vmem:[%s276 + $0x8] sm:$0xff]
        %v342 = vld [vmem:[%s294] sm:$0xff]
        %v343 = vld [vmem:[%s294 + $0x8] sm:$0xff]
        %v344 = vmul.f32 %v342, %v342
        %v345 = vmul.f32 %v343, %v343
        %vm346 = vcmp.gt.f32.partialorder %v340, 0.1
        %vm347 = vcmp.gt.f32.partialorder %v341, 0.1
        %v348 = vsel %vm346, 1.0, 0.0
        %v349 = vsel %vm347, 1.0, 0.0
        %v350 = vpack.c.bf16 %v349, %v348
        %v351 = vpack.c.bf16 %v343, %v342
        %v352 = vpack.c.bf16 %v345, %v344
        %v355 = vunpack.c.l.b16 %v338
        %v356 = vunpack.c.l.b16 %v339
        %v357 = vpack.c.b16 %v356, %v355
        %vm359 = vcmask 130048
        %v361 = vsel %vm359, %v350, 0
        %v364 = vsel %vm359, %v351, 0
        %v367 = vsel %vm359, %v352, 0
        %369 = vmatprep.subr.bf16.mxu0 0
        %370 = vmatpush1.bf16.msra.mxu0 %v357
        %371 = vmatprep.subr.bf16.mxu0 0
        %372 = vmatpush1.bf16.msra.mxu0 0
        %373 = vmatprep.subr.bf16.mxu0 0
        %374 = vmatpush1.bf16.msra.mxu0 0
        %375 = vmatprep.subr.bf16.mxu0 0
        %376 = vmatpush1.bf16.msra.mxu0 0
        %377 = vmatprep.subr.bf16.mxu0 0
        %378 = vmatpush1.bf16.msra.mxu0 0
        %379 = vmatprep.subr.bf16.mxu0 0
        %380 = vmatpush1.bf16.msra.mxu0 0
        %381 = vmatprep.subr.bf16.mxu0 0
        %382 = vmatpush1.bf16.msra.mxu0 0
        %383 = vmatprep.subr.bf16.mxu0 0
        %384 = vmatpush1.bf16.msra.mxu0 0
        %385 = vmatprep.subr.bf16.mxu0 0
        %386 = vmatpush1.bf16.msra.mxu0 0
        %387 = vmatprep.subr.bf16.mxu0 0
        %388 = vmatpush1.bf16.msra.mxu0 0
        %389 = vmatprep.subr.bf16.mxu0 0
        %390 = vmatpush1.bf16.msra.mxu0 0
        %391 = vmatprep.subr.bf16.mxu0 0
        %392 = vmatpush1.bf16.msra.mxu0 0
        %393 = vmatprep.subr.bf16.mxu0 0
        %394 = vmatpush1.bf16.msra.mxu0 0
        %395 = vmatprep.subr.bf16.mxu0 0
        %396 = vmatpush1.bf16.msra.mxu0 0
        %397 = vmatprep.subr.bf16.mxu0 0
        %398 = vmatpush1.bf16.msra.mxu0 0
        %399 = vmatprep.subr.bf16.mxu0 0
        %400 = vmatpush1.bf16.msra.mxu0 0
        %401 = vmatprep.mubr.bf16.mxu0 0
        %402 = vmatmul.mubr.bf16.gmra.mrb[0].mxu0 %v361
        %v403 = vpop.f32.mrb[0].mxu0
        %v404 = vadd.f32 0.0, %v403
        %v405 = vpop.f32.mrb[0].mxu0
        %v406 = vpop.f32.mrb[0].mxu0
        %v407 = vadd.f32 0.0, %v406
        %v408 = vpop.f32.mrb[0].mxu0
        %409 = vmatprep.mubr.bf16.mxu0 0
        %410 = vmatmul.mubr.bf16.gmra.mrb[0].mxu0 %v364
        %v411 = vpop.f32.mrb[0].mxu0
        %v412 = vadd.f32 0.0, %v411
        %v413 = vpop.f32.mrb[0].mxu0
        %v414 = vpop.f32.mrb[0].mxu0
        %v415 = vadd.f32 0.0, %v414
        %v416 = vpop.f32.mrb[0].mxu0
        %417 = vmatprep.mubr.bf16.mxu0 0
        %418 = vmatmul.mubr.bf16.gmra.mrb[0].mxu0 %v367
        %v419 = vpop.f32.mrb[0].mxu0
        %v420 = vadd.f32 0.0, %v419
        %v421 = vpop.f32.mrb[0].mxu0
        %v422 = vpop.f32.mrb[0].mxu0
        %v423 = vadd.f32 0.0, %v422
        %v424 = vpop.f32.mrb[0].mxu0
        %425 = vdwg.mxu0
        %v426 = vpack.c.bf16 %v407, %v404
        %v427 = vpack.c.bf16 %v415, %v412
        %v428 = vpack.c.bf16 %v423, %v420
        %430 = vrot.lane.b32.xlu0 %v427, 16
        %v431 = vpop.permute.xlu0 %430
        %433 = vrot.lane.b32.xlu0 %v428, 32
        %v434 = vpop.permute.xlu0 %433
        %v437 = vsel %vm359, %v426, %v431
        %vm438 = vcmask 261120
        %v440 = vsel %vm438, %v437, %v434
        %v444 = vunpack.c.l.b16 %v336
        %v445 = vunpack.c.l.b16 %v337
        %v446 = vpack.c.b16 %v445, %v444
        %v448 = vsel %vm359, %v446, 0
        %450 = vmatprep.subr.bf16.mxu0 0
        %451 = vmatpush1.bf16.msra.mxu0 %v440
        %452 = vmatprep.subr.bf16.mxu0 0
        %453 = vmatpush1.bf16.msra.mxu0 0
        %454 = vmatprep.subr.bf16.mxu0 0
        %455 = vmatpush1.bf16.msra.mxu0 0
        %456 = vmatprep.subr.bf16.mxu0 0
        %457 = vmatpush1.bf16.msra.mxu0 0
        %458 = vmatprep.subr.bf16.mxu0 0
        %459 = vmatpush1.bf16.msra.mxu0 0
        %460 = vmatprep.subr.bf16.mxu0 0
        %461 = vmatpush1.bf16.msra.mxu0 0
        %462 = vmatprep.subr.bf16.mxu0 0
        %463 = vmatpush1.bf16.msra.mxu0 0
        %464 = vmatprep.subr.bf16.mxu0 0
        %465 = vmatpush1.bf16.msra.mxu0 0
        %466 = vmatprep.subr.bf16.mxu0 0
        %467 = vmatpush1.bf16.msra.mxu0 0
        %468 = vmatprep.subr.bf16.mxu0 0
        %469 = vmatpush1.bf16.msra.mxu0 0
        %470 = vmatprep.subr.bf16.mxu0 0
        %471 = vmatpush1.bf16.msra.mxu0 0
        %472 = vmatprep.subr.bf16.mxu0 0
        %473 = vmatpush1.bf16.msra.mxu0 0
        %474 = vmatprep.subr.bf16.mxu0 0
        %475 = vmatpush1.bf16.msra.mxu0 0
        %476 = vmatprep.subr.bf16.mxu0 0
        %477 = vmatpush1.bf16.msra.mxu0 0
        %478 = vmatprep.subr.bf16.mxu0 0
        %479 = vmatpush1.bf16.msra.mxu0 0
        %480 = vmatprep.subr.bf16.mxu0 0
        %481 = vmatpush1.bf16.msra.mxu0 0
        %482 = vmatprep.mubr.bf16.mxu0 0
        %483 = vmatmul.mubr.bf16.gmra.mrb[0].mxu0 %v448
        %v484 = vpop.f32.mrb[0].mxu0
        %v485 = vadd.f32 0.0, %v484
        %v486 = vpop.f32.mrb[0].mxu0
        %v487 = vpop.f32.mrb[0].mxu0
        %v488 = vadd.f32 0.0, %v487
        %v489 = vpop.f32.mrb[0].mxu0
        %490 = vdwg.mxu0
        %v491 = vadd.f32 %v485, 1e-06
        %v492 = vadd.f32 %v488, 1e-06
        %v493 = vrcp.pop %v491
        %v494 = vmul.f32 1.0, %v493
        %v495 = vrcp.pop %v492
        %v496 = vmul.f32 1.0, %v495
        %499 = vrot.lane.b32.xlu0 %v494, 16
        %v500 = vpop.permute.xlu0 %499
        %501 = vrot.lane.b32.xlu0 %v496, 16
        %v502 = vpop.permute.xlu0 %501
        %v505 = vmul.f32 %v485, %v500
        %v506 = vmul.f32 %v488, %v502
        %507 = vrot.lane.b32.xlu0 %v494, 32
        %v508 = vpop.permute.xlu0 %507
        %509 = vrot.lane.b32.xlu0 %v496, 32
        %v510 = vpop.permute.xlu0 %509
        %v513 = vmul.f32 %v485, %v508
        %v514 = vmul.f32 %v488, %v510
        %517 = vrot.lane.b32.xlu0 %v340, 16
        %v518 = vpop.permute.xlu0 %517
        %519 = vrot.lane.b32.xlu0 %v341, 16
        %v520 = vpop.permute.xlu0 %519
        %v523 = vmul.f32 %v505, %v518
        %v524 = vmul.f32 %v506, %v520
        %v525 = vld [vmem:[%s285] sm:$0xf]
        %v526 = vld [vmem:[%s285 + $0x4] sm:$0xf]
        %v527 = vld [vmem:[%s285 + $0x8] sm:$0xf]
        %v528 = vld [vmem:[%s285 + $0xc] sm:$0xf]
        %v529 = vld [vmem:[%s285 + $0x10] sm:$0xf]
        %v530 = vld [vmem:[%s285 + $0x14] sm:$0xf]
        %v531 = vld [vmem:[%s285 + $0x18] sm:$0xf]
        %v532 = vld [vmem:[%s285 + $0x1c] sm:$0xf]
        %v533 = vunpack.c.l.bf16 %v525
        %v534 = vunpack.c.l.bf16 %v526
        %v535 = vunpack.c.l.bf16 %v527
        %v536 = vunpack.c.l.bf16 %v528
        %v537 = vunpack.c.l.bf16 %v529
        %v538 = vunpack.c.l.bf16 %v530
        %v539 = vunpack.c.l.bf16 %v531
        %v540 = vunpack.c.l.bf16 %v532
        %v541 = vmul.f32 %v533, %v533
        %v542 = vmul.f32 %v534, %v534
        %v543 = vmul.f32 %v535, %v535
        %v544 = vmul.f32 %v536, %v536
        %v545 = vmul.f32 %v537, %v537
        %v546 = vmul.f32 %v538, %v538
        %v547 = vmul.f32 %v539, %v539
        %v548 = vmul.f32 %v540, %v540
        %551 = vrot.lane.b32.xlu0 %v523, 112
        %v552 = vpop.permute.xlu0 %551
        %553 = vrot.lane.b32.xlu0 %v524, 112
        %v554 = vpop.permute.xlu0 %553
        %v557 = vmul.f32 %v541, %v552
        %v558 = vmul.f32 %v542, %v554
        %v559 = vmul.f32 %v543, %v552
        %v560 = vmul.f32 %v544, %v554
        %v561 = vmul.f32 %v545, %v552
        %v562 = vmul.f32 %v546, %v554
        %v563 = vmul.f32 %v547, %v552
        %v564 = vmul.f32 %v548, %v554
        %v565 = vsel %vm359, %v557, 0.0
        %566 = vadd.xlane.f32.xlu0 %v565
        %v567 = vpop.xlane.xlu0 %566
        %v568 = vsel %vm359, %v558, 0.0
        %569 = vadd.xlane.f32.xlu0 %v568
        %v570 = vpop.xlane.xlu0 %569
        %v571 = vsel %vm359, %v559, 0.0
        %572 = vadd.xlane.f32.xlu0 %v571
        %v573 = vpop.xlane.xlu0 %572
        %v574 = vsel %vm359, %v560, 0.0
        %575 = vadd.xlane.f32.xlu0 %v574
        %v576 = vpop.xlane.xlu0 %575
        %v577 = vsel %vm359, %v561, 0.0
        %578 = vadd.xlane.f32.xlu0 %v577
        %v579 = vpop.xlane.xlu0 %578
        %v580 = vsel %vm359, %v562, 0.0
        %581 = vadd.xlane.f32.xlu0 %v580
        %v582 = vpop.xlane.xlu0 %581
        %v583 = vsel %vm359, %v563, 0.0
        %584 = vadd.xlane.f32.xlu0 %v583
        %v585 = vpop.xlane.xlu0 %584
        %v586 = vsel %vm359, %v564, 0.0
        %587 = vadd.xlane.f32.xlu0 %v586
        %v588 = vpop.xlane.xlu0 %587
        %v589 = vadd.f32 %v567, %v570
        %v590 = vrot.slane %v589, 4
        %v591 = vadd.f32 %v589, %v590
        %v592 = vrot.slane %v591, 2
        %v593 = vadd.f32 %v591, %v592
        %v594 = vrot.slane %v593, 1
        %v595 = vadd.f32 %v593, %v594
        %v596 = vadd.f32 %v573, %v576
        %v597 = vrot.slane %v596, 4
        %v598 = vadd.f32 %v596, %v597
        %v599 = vrot.slane %v598, 2
        %v600 = vadd.f32 %v598, %v599
        %v601 = vrot.slane %v600, 1
        %v602 = vadd.f32 %v600, %v601
        %v603 = vadd.f32 %v579, %v582
        %v604 = vrot.slane %v603, 4
        %v605 = vadd.f32 %v603, %v604
        %v606 = vrot.slane %v605, 2
        %v607 = vadd.f32 %v605, %v606
        %v608 = vrot.slane %v607, 1
        %v609 = vadd.f32 %v607, %v608
        %v610 = vadd.f32 %v585, %v588
        %v611 = vrot.slane %v610, 4
        %v612 = vadd.f32 %v610, %v611
        %v613 = vrot.slane %v612, 2
        %v614 = vadd.f32 %v612, %v613
        %v615 = vrot.slane %v614, 1
        %v616 = vadd.f32 %v614, %v615
        %619 = vrot.lane.b32.xlu0 %v513, 96
        %v620 = vpop.permute.xlu0 %619
        %621 = vrot.lane.b32.xlu0 %v514, 96
        %v622 = vpop.permute.xlu0 %621
        %v625 = vmul.f32 %v541, %v620
        %v626 = vmul.f32 %v542, %v622
        %v627 = vmul.f32 %v543, %v620
        %v628 = vmul.f32 %v544, %v622
        %v629 = vmul.f32 %v545, %v620
        %v630 = vmul.f32 %v546, %v622
        %v631 = vmul.f32 %v547, %v620
        %v632 = vmul.f32 %v548, %v622
        %v633 = vsel %vm359, %v625, 0.0
        %634 = vadd.xlane.f32.xlu0 %v633
        %v635 = vpop.xlane.xlu0 %634
        %v636 = vsel %vm359, %v626, 0.0
        %637 = vadd.xlane.f32.xlu0 %v636
        %v638 = vpop.xlane.xlu0 %637
        %v639 = vsel %vm359, %v627, 0.0
        %640 = vadd.xlane.f32.xlu0 %v639
        %v641 = vpop.xlane.xlu0 %640
        %v642 = vsel %vm359, %v628, 0.0
        %643 = vadd.xlane.f32.xlu0 %v642
        %v644 = vpop.xlane.xlu0 %643
        %v645 = vsel %vm359, %v629, 0.0
        %646 = vadd.xlane.f32.xlu0 %v645
        %v647 = vpop.xlane.xlu0 %646
        %v648 = vsel %vm359, %v630, 0.0
        %649 = vadd.xlane.f32.xlu0 %v648
        %v650 = vpop.xlane.xlu0 %649
        %v651 = vsel %vm359, %v631, 0.0
        %652 = vadd.xlane.f32.xlu0 %v651
        %v653 = vpop.xlane.xlu0 %652
        %v654 = vsel %vm359, %v632, 0.0
        %655 = vadd.xlane.f32.xlu0 %v654
        %v656 = vpop.xlane.xlu0 %655
        %v657 = vadd.f32 %v635, %v638
        %v658 = vrot.slane %v657, 4
        %v659 = vadd.f32 %v657, %v658
        %v660 = vrot.slane %v659, 2
        %v661 = vadd.f32 %v659, %v660
        %v662 = vrot.slane %v661, 1
        %v663 = vadd.f32 %v661, %v662
        %v664 = vadd.f32 %v641, %v644
        %v665 = vrot.slane %v664, 4
        %v666 = vadd.f32 %v664, %v665
        %v667 = vrot.slane %v666, 2
        %v668 = vadd.f32 %v666, %v667
        %v669 = vrot.slane %v668, 1
        %v670 = vadd.f32 %v668, %v669
        %v671 = vadd.f32 %v647, %v650
        %v672 = vrot.slane %v671, 4
        %v673 = vadd.f32 %v671, %v672
        %v674 = vrot.slane %v673, 2
        %v675 = vadd.f32 %v673, %v674
        %v676 = vrot.slane %v675, 1
        %v677 = vadd.f32 %v675, %v676
        %v678 = vadd.f32 %v653, %v656
        %v679 = vrot.slane %v678, 4
        %v680 = vadd.f32 %v678, %v679
        %v681 = vrot.slane %v680, 2
        %v682 = vadd.f32 %v680, %v681
        %v683 = vrot.slane %v682, 1
        %v684 = vadd.f32 %v682, %v683
        %v685 = vadd.f32 %v663, 1e-06
        %v686 = vadd.f32 %v670, 1e-06
        %v687 = vadd.f32 %v677, 1e-06
        %v688 = vadd.f32 %v684, 1e-06
        %v689 = vrcp.pop %v685
        %v690 = vmul.f32 %v595, %v689
        %v691 = vrcp.pop %v686
        %v692 = vmul.f32 %v602, %v691
        %v693 = vrcp.pop %v687
        %v694 = vmul.f32 %v609, %v693
        %v695 = vrcp.pop %v688
        %v696 = vmul.f32 %v616, %v695
        %v697 = vmul.f32 %v690, %v541
        %v698 = vmul.f32 %v690, %v542
        %v699 = vmul.f32 %v692, %v543
        %v700 = vmul.f32 %v692, %v544
        %v701 = vmul.f32 %v694, %v545
        %v702 = vmul.f32 %v694, %v546
        %v703 = vmul.f32 %v696, %v547
        %v704 = vmul.f32 %v696, %v548
        %v705 = vsel %vm359, %v697, 0.0
        %v706 = vsel %vm359, %v699, 0.0
        %v707 = vadd.f32 %v705, %v706
        %v708 = vsel %vm359, %v701, 0.0
        %v709 = vadd.f32 %v707, %v708
        %v710 = vsel %vm359, %v703, 0.0
        %v711 = vadd.f32 %v709, %v710
        %v712 = vsel %vm359, %v698, 0.0
        %v713 = vsel %vm359, %v700, 0.0
        %v714 = vadd.f32 %v712, %v713
        %v715 = vsel %vm359, %v702, 0.0
        %v716 = vadd.f32 %v714, %v715
        %v717 = vsel %vm359, %v704, 0.0
        %v718 = vadd.f32 %v716, %v717
        %v719 = vmul.f32 %v711, %v340
        %v720 = vmul.f32 %v718, %v341
        %v721 = vmul.f32 %v690, %v690
        %v722 = vmul.f32 %v692, %v692
        %v723 = vmul.f32 %v694, %v694
        %v724 = vmul.f32 %v696, %v696
        %v725 = vmul.f32 %v721, %v541
        %v726 = vmul.f32 %v721, %v542
        %v727 = vmul.f32 %v722, %v543
        %v728 = vmul.f32 %v722, %v544
        %v729 = vmul.f32 %v723, %v545
        %v730 = vmul.f32 %v723, %v546
        %v731 = vmul.f32 %v724, %v547
        %v732 = vmul.f32 %v724, %v548
        %v733 = vsel %vm359, %v725, 0.0
        %v734 = vsel %vm359, %v727, 0.0
        %v735 = vadd.f32 %v733, %v734
        %v736 = vsel %vm359, %v729, 0.0
        %v737 = vadd.f32 %v735, %v736
        %v738 = vsel %vm359, %v731, 0.0
        %v739 = vadd.f32 %v737, %v738
        %v740 = vsel %vm359, %v726, 0.0
        %v741 = vsel %vm359, %v728, 0.0
        %v742 = vadd.f32 %v740, %v741
        %v743 = vsel %vm359, %v730, 0.0
        %v744 = vadd.f32 %v742, %v743
        %v745 = vsel %vm359, %v732, 0.0
        %v746 = vadd.f32 %v744, %v745
        %v747 = vpack.c.bf16 %v720, %v719
        %v748 = vpack.c.bf16 %v746, %v739
        %v750 = vsel %vm359, %v747, 0
        %v753 = vsel %vm359, %v748, 0
        %755 = vmatprep.subr.bf16.mxu0 0
        %756 = vmatpush1.bf16.msra.mxu0 %v357
        %757 = vmatprep.subr.bf16.mxu0 0
        %758 = vmatpush1.bf16.msra.mxu0 0
        %759 = vmatprep.subr.bf16.mxu0 0
        %760 = vmatpush1.bf16.msra.mxu0 0
        %761 = vmatprep.subr.bf16.mxu0 0
        %762 = vmatpush1.bf16.msra.mxu0 0
        %763 = vmatprep.subr.bf16.mxu0 0
        %764 = vmatpush1.bf16.msra.mxu0 0
        %765 = vmatprep.subr.bf16.mxu0 0
        %766 = vmatpush1.bf16.msra.mxu0 0
        %767 = vmatprep.subr.bf16.mxu0 0
        %768 = vmatpush1.bf16.msra.mxu0 0
        %769 = vmatprep.subr.bf16.mxu0 0
        %770 = vmatpush1.bf16.msra.mxu0 0
        %771 = vmatprep.subr.bf16.mxu0 0
        %772 = vmatpush1.bf16.msra.mxu0 0
        %773 = vmatprep.subr.bf16.mxu0 0
        %774 = vmatpush1.bf16.msra.mxu0 0
        %775 = vmatprep.subr.bf16.mxu0 0
        %776 = vmatpush1.bf16.msra.mxu0 0
        %777 = vmatprep.subr.bf16.mxu0 0
        %778 = vmatpush1.bf16.msra.mxu0 0
        %779 = vmatprep.subr.bf16.mxu0 0
        %780 = vmatpush1.bf16.msra.mxu0 0
        %781 = vmatprep.subr.bf16.mxu0 0
        %782 = vmatpush1.bf16.msra.mxu0 0
        %783 = vmatprep.subr.bf16.mxu0 0
        %784 = vmatpush1.bf16.msra.mxu0 0
        %785 = vmatprep.subr.bf16.mxu0 0
        %786 = vmatpush1.bf16.msra.mxu0 0
        %787 = vmatprep.mubr.bf16.mxu0 0
        %788 = vmatmul.mubr.bf16.gmra.mrb[0].mxu0 %v750
        %v789 = vpop.f32.mrb[0].mxu0
        %v790 = vadd.f32 0.0, %v789
        %v791 = vpop.f32.mrb[0].mxu0
        %v792 = vpop.f32.mrb[0].mxu0
        %v793 = vadd.f32 0.0, %v792
        %v794 = vpop.f32.mrb[0].mxu0
        %795 = vmatprep.mubr.bf16.mxu0 0
        %796 = vmatmul.mubr.bf16.gmra.mrb[0].mxu0 %v753
        %v797 = vpop.f32.mrb[0].mxu0
        %v798 = vadd.f32 0.0, %v797
        %v799 = vpop.f32.mrb[0].mxu0
        %v800 = vpop.f32.mrb[0].mxu0
        %v801 = vadd.f32 0.0, %v800
        %v802 = vpop.f32.mrb[0].mxu0
        %803 = vdwg.mxu0
        %v804 = vpack.c.bf16 %v793, %v790
        %v805 = vpack.c.bf16 %v801, %v798
        %807 = vrot.lane.b32.xlu0 %v805, 16
        %v808 = vpop.permute.xlu0 %807
        %v811 = vsel %vm359, %v804, %v808
        %813 = vmatprep.subr.bf16.mxu0 0
        %814 = vmatpush1.bf16.msra.mxu0 %v811
        %815 = vmatprep.subr.bf16.mxu0 0
        %816 = vmatpush1.bf16.msra.mxu0 0
        %817 = vmatprep.subr.bf16.mxu0 0
        %818 = vmatpush1.bf16.msra.mxu0 0
        %819 = vmatprep.subr.bf16.mxu0 0
        %820 = vmatpush1.bf16.msra.mxu0 0
        %821 = vmatprep.subr.bf16.mxu0 0
        %822 = vmatpush1.bf16.msra.mxu0 0
        %823 = vmatprep.subr.bf16.mxu0 0
        %824 = vmatpush1.bf16.msra.mxu0 0
        %825 = vmatprep.subr.bf16.mxu0 0
        %826 = vmatpush1.bf16.msra.mxu0 0
        %827 = vmatprep.subr.bf16.mxu0 0
        %828 = vmatpush1.bf16.msra.mxu0 0
        %829 = vmatprep.subr.bf16.mxu0 0
        %830 = vmatpush1.bf16.msra.mxu0 0
        %831 = vmatprep.subr.bf16.mxu0 0
        %832 = vmatpush1.bf16.msra.mxu0 0
        %833 = vmatprep.subr.bf16.mxu0 0
        %834 = vmatpush1.bf16.msra.mxu0 0
        %835 = vmatprep.subr.bf16.mxu0 0
        %836 = vmatpush1.bf16.msra.mxu0 0
        %837 = vmatprep.subr.bf16.mxu0 0
        %838 = vmatpush1.bf16.msra.mxu0 0
        %839 = vmatprep.subr.bf16.mxu0 0
        %840 = vmatpush1.bf16.msra.mxu0 0
        %841 = vmatprep.subr.bf16.mxu0 0
        %842 = vmatpush1.bf16.msra.mxu0 0
        %843 = vmatprep.subr.bf16.mxu0 0
        %844 = vmatpush1.bf16.msra.mxu0 0
        %845 = vmatprep.mubr.bf16.mxu0 0
        %846 = vmatmul.mubr.bf16.gmra.mrb[0].mxu0 %v448
        %v847 = vpop.f32.mrb[0].mxu0
        %v848 = vadd.f32 0.0, %v847
        %v849 = vpop.f32.mrb[0].mxu0
        %v850 = vpop.f32.mrb[0].mxu0
        %v851 = vadd.f32 0.0, %v850
        %v852 = vpop.f32.mrb[0].mxu0
        %853 = vdwg.mxu0
        %v854 = vmul.f32 %v848, %v494
        %v855 = vmul.f32 %v851, %v496
        %v856 = vmul.f32 %v848, %v500
        %v857 = vmul.f32 %v851, %v502
        %v858 = vmul.f32 %v854, %v348
        %v859 = vmul.f32 %v855, %v349
        %v860 = vsub.f32 1.0, %v348
        %v861 = vsub.f32 1.0, %v349
        %v862 = vadd.f32 %v858, %v860
        %v863 = vadd.f32 %v859, %v861
        %866 = vrot.lane.b32.xlu0 %v348, 16
        %v867 = vpop.permute.xlu0 %866
        %868 = vrot.lane.b32.xlu0 %v349, 16
        %v869 = vpop.permute.xlu0 %868
        %v872 = vmul.f32 %v856, %v867
        %v873 = vmul.f32 %v857, %v869
        %876 = vrot.lane.b32.xlu0 %v860, 16
        %v877 = vpop.permute.xlu0 %876
        %878 = vrot.lane.b32.xlu0 %v861, 16
        %v879 = vpop.permute.xlu0 %878
        %v882 = vadd.f32 %v872, %v877
        %v883 = vadd.f32 %v873, %v879
        %v884 = vadd.f32 %v862, 1e-09
        %v885 = vadd.f32 %v863, 1e-09
        %v886 = vadd.f32 %v882, 1e-09
        %v887 = vadd.f32 %v883, 1e-09
        %890 = vrot.lane.b32.xlu0 %v886, 112
        %v891 = vpop.permute.xlu0 %890
        %892 = vrot.lane.b32.xlu0 %v887, 112
        %v893 = vpop.permute.xlu0 %892
        %v896 = vrcp.pop %v891
        %v897 = vmul.f32 %v884, %v896
        %v898 = vrcp.pop %v893
        %v899 = vmul.f32 %v885, %v898
        %v900 = vsub.f32 %v342, %v897
        %v901 = vsub.f32 %v343, %v899
        %v902 = vmul.f32 %v900, %v900
        %v903 = vmul.f32 %v901, %v901
        %v904 = vsel %vm359, %v902, 0.0
        %v905 = vsel %vm359, %v903, 0.0
        %v906 = vadd.f32 %v904, %v905
        %907 = vadd.xlane.f32.xlu0 %v906
        %v908 = vpop.xlane.xlu0 %907
        %v909 = vrot.slane %v908, 4
        %v910 = vadd.f32 %v908, %v909
        %v911 = vrot.slane %v910, 2
        %v912 = vadd.f32 %v910, %v911
        %v913 = vrot.slane %v912, 1
        %v914 = vadd.f32 %v912, %v913
        %s915 = vtos %v914
        %v916 = vrcp.pop 256.0
        %s917 = vtos %v916
        %s918 = smul.f32 %s915, %s917
        %v919 = vstv %s918
        %920 = vst [vmem:[%s334] sm:$0xff] %v919
        %s921 = sand.u32 %s154, 1
        %s922 = scalar_lea.sflag [#allocation4], %s921
        %s923 = sand.u32 %s154, 1
        %s924 = smul.addr %s923, 8
        %s925 = scalar_lea.vmem [#allocation10], %s924
        // Predicated region
        $region57: #{tpu_custom_call.1} parent=39 // pred_check
          %p926 = pneg %p164
        $region58: #{tpu_custom_call.1} parent=39 // pred_check_branch
          %928 = sbr.rel (%p926) target = $region60
        $region59: #{tpu_custom_call.1} parent=39 // pred_region
          %s930 = ssub.s32 128, 128
          %931 = vsyncadd %s922, %s930
          %s932 = smul.addr %s26, 128
          %s933 = scalar_lea.hbm %s5, %s932
          %s935 = sshll.u32 %s925, 4
          %s936 = int_to_ptr.vmem [resolvable:$true] %s935
          %938 = dma.vmem_to_hbm [thread:$0]  %s936, 128, %s933, %s922
        $region60: #{tpu_custom_call.1} parent=39 // pred_fallthru
          _
      $region40: #{tpu_custom_call.1} parent=5 // pred_fallthru
        _
      %p939 = scmp.le.s32.totalorder 2, %s21
      // Predicated region
      $region61: #{tpu_custom_call.1} parent=5 // pred_check
        %p940 = pneg %p939
      $region62: #{tpu_custom_call.1} parent=5 // pred_check_branch
        %942 = sbr.rel (%p940) target = $region64
      $region63: #{tpu_custom_call.1} parent=5 // pred_region
        %s943 = ssub.s32 %s21, 2
        // Predicated region
        $region65: #{tpu_custom_call.1} parent=63 // pred_check
          %p944 = pneg %p170
        $region66: #{tpu_custom_call.1} parent=63 // pred_check_branch
          %946 = sbr.rel (%p944) target = $region68
        $region67: #{tpu_custom_call.1} parent=63 // pred_region
          %s947 = sand.u32 %s155, 1
          %s948 = scalar_lea.sflag [#allocation4], %s947
          %s949 = sand.u32 %s155, 1
          %s950 = smul.addr %s949, 8
          %s951 = scalar_lea.vmem [#allocation10], %s950
          %952 = dma.done %s948, 128
        $region68: #{tpu_custom_call.1} parent=63 // pred_fallthru
          _
      $region64: #{tpu_custom_call.1} parent=5 // pred_fallthru
        _
    $region6: #{tpu_custom_call.1} parent=1 // loop_footer
      %s25 = sadd.s32 1, %s21
    $region7: #{tpu_custom_call.1} parent=1 // loop_footer_branch
      %20 = sbr.rel target = $region3
    $region8: #{tpu_custom_call.1} parent=1 // loop_exit
      _
    %953 = vsyncpa [#allocation3], 1
    %s954 = scalar_lea.sflag [#allocation3], 1
    %955 = vsyncpa %s954, 1
    %956 = vsyncpa [#allocation6], 1
    %s957 = scalar_lea.sflag [#allocation6], 1
    %958 = vsyncpa %s957, 1
    %959 = vsyncpa [#allocation9], 1
    %960 = vsyncpa [#allocation4], 1
    %s961 = scalar_lea.sflag [#allocation4], 1
    %962 = vsyncpa %s961, 1

// kernel: tpu_custom_call.1
$region0: #{tpu_custom_call.1}
  #allocation0 [shape = 'u32[]', space=smem, size = 0x4, offset = 0x4, fixed_abs, tag = 'smem constant byte address 0x4 - core index']
  #allocation1 [shape = 'u32[144,128]{1,0:T(1,128)}', space=vmem, size = 0x12000, scoped, tag = 'internal scratch']
  %s0 = inlined_call_operand.hbm [shape: f32[2,1,16,16], index: 0, kind: input, shape index: {}]
  %s1 = inlined_call_operand.hbm [shape: bf16[2,4,16,16], index: 1, kind: input, shape index: {}]
  %s2 = inlined_call_operand.hbm [shape: f32[2,1,16,16], index: 2, kind: input, shape index: {}]
  %s3 = inlined_call_operand.vmem [shape: bf16[16,16], index: 3, kind: input, shape index: {}]
  %s4 = inlined_call_operand.hbm [shape: bf16[16,16], index: 4, kind: input, shape index: {}]
  %s5 = inlined_call_operand.hbm [shape: f32[2,8,128], index: 5, kind: output, shape index: {}]
  %s6 = sld [smem:[#allocation0]]
  $region69: #{tpu_custom_call.1} parent=0
    _
  %s8 = ssub.s32 1, %s6
  %s9 = scalar_select 0, %s8, %s6
  $region1: #{tpu_custom_call.1} parent=0
    #allocation2 [shape = 'u8[16384]{0}', space=vmem, size = 0x4000, scoped, tag = 'input window, operand 0']
    #allocation3 [shape = 's32[2]{0}', space=sflag, size = 0x8, scoped, tag = 'scoped memory for tpu_custom_call.1']
    #allocation4 [shape = 's32[2]{0}', space=sflag, size = 0x8, scoped, tag = 'scoped memory for tpu_custom_call.1']
    #allocation5 [shape = 'u8[32768]{0}', space=vmem, size = 0x8000, scoped, tag = 'input window, operand 1']
    #allocation6 [shape = 's32[2]{0}', space=sflag, size = 0x8, scoped, tag = 'scoped memory for tpu_custom_call.1']
    #allocation7 [shape = 'u8[16384]{0}', space=vmem, size = 0x4000, scoped, tag = 'input window, operand 2']
    #allocation8 [shape = 'u8[4096]{0}', space=vmem, size = 0x1000, scoped, tag = 'input window, operand 4, single buffered']
    #allocation9 [shape = 's32[1]{0}', space=sflag, size = 0x4, scoped, tag = 'scoped memory for tpu_custom_call.1']
    #allocation10 [shape = 'u8[8192]{0}', space=vmem, size = 0x2000, scoped, tag = 'output window, operand 0']
    %10 = vsyncpa [#allocation3], 0
    %s11 = scalar_lea.sflag [#allocation3], 1
    %12 = vsyncpa %s11, 0
    %13 = vsyncpa [#allocation6], 0
    %s14 = scalar_lea.sflag [#allocation6], 1
    %15 = vsyncpa %s14, 0
    %16 = vsyncpa [#allocation9], 0
    %17 = vsyncpa [#allocation4], 0
    %s18 = scalar_lea.sflag [#allocation4], 1
    %19 = vsyncpa %s18, 0
    loop: start=0, step=1, limit=4
    $region2: #{tpu_custom_call.1} parent=1 // loop_pre_header
      _
    $region3: #{tpu_custom_call.1} parent=1 // loop_header
      %s21 = sphi 0, %s25
      %p22 = scmp.ge.s32.totalorder %s21, 4
      %s31 = sphi 0, %s33
      %s34 = sphi 0, %s31
      %s35 = sphi 0, %s34
      %s51 = sphi 0, %s35
      %s57 = sphi 0, %s59
      %s60 = sphi 0, %s57
      %s61 = sphi 0, %s60
      %s77 = sphi 0, %s61
      %s83 = sphi 0, %s85
      %s86 = sphi 0, %s83
      %s87 = sphi 0, %s86
      %s103 = sphi 0, %s87
      %s107 = sphi 0, %s107
      %s109 = sphi 0, %s107
      %s110 = sphi 0, %s109
      %s124 = sphi 0, %s110
      %s128 = sphi 0, %s128
      %s130 = sphi 0, %s128
      %s131 = sphi 0, %s130
      %s145 = sphi 0, %s131
      %s151 = sphi 0, %s153
      %s154 = sphi 0, %s151
      %s155 = sphi 0, %s154
      %s171 = sphi 0, %s155
    $region4: #{tpu_custom_call.1} parent=1 // loop_header_branch
      %24 = sbr.rel (%p22) target = $region8
    $region5: #{tpu_custom_call.1} parent=1 // loop_body
      %s26 = ssub.s32 %s21, 1
      %s27 = ssub.s32 %s21, 2
      %s28 = sadd.s32 %s21, 1
      %s29 = ssub.s32 %s21, %s28
      %p30 = scmp.eq.s32.totalorder %s29, 0
      %s32 = sadd.s32 %s31, 1
      %s33 = scalar_select %p30, %s31, %s32
      %p36 = pneg %p30
      %p37 = scmp.eq.s32.totalorder %s21, 1
      %p38 = por %p36, %p37
      %p39 = scmp.ne.s32.totalorder %s31, %s34
      %p40 = scmp.eq.s32.totalorder %s21, 0
      %p41 = por %p39, %p40
      %p42 = scmp.ne.s32.totalorder %s31, %s34
      %p43 = scmp.eq.s32.totalorder %s26, 1
      %p44 = por %p42, %p43
      %p45 = scmp.ne.s32.totalorder %s34, %s35
      %p46 = scmp.eq.s32.totalorder %s26, 0
      %p47 = por %p45, %p46
      %p48 = scmp.ne.s32.totalorder %s34, %s35
      %p49 = scmp.eq.s32.totalorder %s27, 1
      %p50 = por %p48, %p49
      %p52 = scmp.ne.s32.totalorder %s35, %s51
      %p53 = scmp.eq.s32.totalorder %s27, 0
      %p54 = por %p52, %p53
      %s55 = ssub.s32 %s21, %s28
      %p56 = scmp.eq.s32.totalorder %s55, 0
      %s58 = sadd.s32 %s57, 1
      %s59 = scalar_select %p56, %s57, %s58
      %p62 = pneg %p56
      %p63 = scmp.eq.s32.totalorder %s21, 1
      %p64 = por %p62, %p63
      %p65 = scmp.ne.s32.totalorder %s57, %s60
      %p66 = scmp.eq.s32.totalorder %s21, 0
      %p67 = por %p65, %p66
      %p68 = scmp.ne.s32.totalorder %s57, %s60
      %p69 = scmp.eq.s32.totalorder %s26, 1
      %p70 = por %p68, %p69
      %p71 = scmp.ne.s32.totalorder %s60, %s61
      %p72 = scmp.eq.s32.totalorder %s26, 0
      %p73 = por %p71, %p72
      %p74 = scmp.ne.s32.totalorder %s60, %s61
      %p75 = scmp.eq.s32.totalorder %s27, 1
      %p76 = por %p74, %p75
      %p78 = scmp.ne.s32.totalorder %s61, %s77
      %p79 = scmp.eq.s32.totalorder %s27, 0
      %p80 = por %p78, %p79
      %s81 = ssub.s32 %s21, %s28
      %p82 = scmp.eq.s32.totalorder %s81, 0
      %s84 = sadd.s32 %s83, 1
      %s85 = scalar_select %p82, %s83, %s84
      %p88 = pneg %p82
      %p89 = scmp.eq.s32.totalorder %s21, 1
      %p90 = por %p88, %p89
      %p91 = scmp.ne.s32.totalorder %s83, %s86
      %p92 = scmp.eq.s32.totalorder %s21, 0
      %p93 = por %p91, %p92
      %p94 = scmp.ne.s32.totalorder %s83, %s86
      %p95 = scmp.eq.s32.totalorder %s26, 1
      %p96 = por %p94, %p95
      %p97 = scmp.ne.s32.totalorder %s86, %s87
      %p98 = scmp.eq.s32.totalorder %s26, 0
      %p99 = por %p97, %p98
      %p100 = scmp.ne.s32.totalorder %s86, %s87
      %p101 = scmp.eq.s32.totalorder %s27, 1
      %p102 = por %p100, %p101
      %p104 = scmp.ne.s32.totalorder %s87, %s103
      %p105 = scmp.eq.s32.totalorder %s27, 0
      %p106 = por %p104, %p105
      %s108 = sadd.s32 %s107, 1
      %p111 = scmp.eq.s32.totalorder %s21, 1
      %p112 = scmp.ne.s32.totalorder %s107, %s109
      %p113 = scmp.eq.s32.totalorder %s21, 0
      %p114 = por %p112, %p113
      %p115 = scmp.ne.s32.totalorder %s107, %s109
      %p116 = scmp.eq.s32.totalorder %s26, 1
      %p117 = por %p115, %p116
      %p118 = scmp.ne.s32.totalorder %s109, %s110
      %p119 = scmp.eq.s32.totalorder %s26, 0
      %p120 = por %p118, %p119
      %p121 = scmp.ne.s32.totalorder %s109, %s110
      %p122 = scmp.eq.s32.totalorder %s27, 1
      %p123 = por %p121, %p122
      %p125 = scmp.ne.s32.totalorder %s110, %s124
      %p126 = scmp.eq.s32.totalorder %s27, 0
      %p127 = por %p125, %p126
      %s129 = sadd.s32 %s128, 1
      %p132 = scmp.eq.s32.totalorder %s21, 1
      %p133 = scmp.ne.s32.totalorder %s128, %s130
      %p134 = scmp.eq.s32.totalorder %s21, 0
      %p135 = por %p133, %p134
      %p136 = scmp.ne.s32.totalorder %s128, %s130
      %p137 = scmp.eq.s32.totalorder %s26, 1
      %p138 = por %p136, %p137
      %p139 = scmp.ne.s32.totalorder %s130, %s131
      %p140 = scmp.eq.s32.totalorder %s26, 0
      %p141 = por %p139, %p140
      %p142 = scmp.ne.s32.totalorder %s130, %s131
      %p143 = scmp.eq.s32.totalorder %s27, 1
      %p144 = por %p142, %p143
      %p146 = scmp.ne.s32.totalorder %s131, %s145
      %p147 = scmp.eq.s32.totalorder %s27, 0
      %p148 = por %p146, %p147
      %s149 = ssub.s32 %s21, %s28
      %p150 = scmp.eq.s32.totalorder %s149, 0
      %s152 = sadd.s32 %s151, 1
      %s153 = scalar_select %p150, %s151, %s152
      %p156 = pneg %p150
      %p157 = scmp.eq.s32.totalorder %s21, 1
      %p158 = por %p156, %p157
      %p159 = scmp.ne.s32.totalorder %s151, %s154
      %p160 = scmp.eq.s32.totalorder %s21, 0
      %p161 = por %p159, %p160
      %p162 = scmp.ne.s32.totalorder %s151, %s154
      %p163 = scmp.eq.s32.totalorder %s26, 1
      %p164 = por %p162, %p163
      %p165 = scmp.ne.s32.totalorder %s154, %s155
      %p166 = scmp.eq.s32.totalorder %s26, 0
      %p167 = por %p165, %p166
      %p168 = scmp.ne.s32.totalorder %s154, %s155
      %p169 = scmp.eq.s32.totalorder %s27, 1
      %p170 = por %p168, %p169
      %p172 = scmp.ne.s32.totalorder %s155, %s171
      %p173 = scmp.eq.s32.totalorder %s27, 0
      %p174 = por %p172, %p173
      %p175 = scmp.le.s32.totalorder 1, %s21
      %p176 = scmp.lt.s32.totalorder %s21, 3
      %p177 = pnand %p175, %p176
      %p178 = pneg %p177
      // Predicated region
      $region9: #{tpu_custom_call.1} parent=5 // pred_check
        _
      $region10: #{tpu_custom_call.1} parent=5 // pred_check_branch
        %180 = sbr.rel (%p177) target = $region12
      $region11: #{tpu_custom_call.1} parent=5 // pred_region
        %s181 = ssub.s32 %s21, 1
        // Predicated region
        $region13: #{tpu_custom_call.1} parent=11 // pred_check
          %p182 = pneg %p120
        $region14: #{tpu_custom_call.1} parent=11 // pred_check_branch
          %184 = sbr.rel (%p182) target = $region16
        $region15: #{tpu_custom_call.1} parent=11 // pred_region
          _
        $region16: #{tpu_custom_call.1} parent=11 // pred_fallthru
          _
        // Predicated region
        $region17: #{tpu_custom_call.1} parent=11 // pred_check
          %p185 = pneg %p141
        $region18: #{tpu_custom_call.1} parent=11 // pred_check_branch
          %187 = sbr.rel (%p185) target = $region20
        $region19: #{tpu_custom_call.1} parent=11 // pred_region
          %s189 = ssub.s32 128, 128
          %190 = vsyncadd [#allocation9], %s189
          %s191 = sshll.u32 [#allocation8], 4
          %s192 = int_to_ptr.vmem [resolvable:$true] %s191
          %197 = dma.hbm_to_vmem [thread:$0]  %s4, 128, %s192, [#allocation9], 64, 64, 4
        $region20: #{tpu_custom_call.1} parent=11 // pred_fallthru
          _
      $region12: #{tpu_custom_call.1} parent=5 // pred_fallthru
        _
      %p198 = scmp.lt.s32.totalorder %s21, 2
      // Predicated region
      $region21: #{tpu_custom_call.1} parent=5 // pred_check
        %p199 = pneg %p198
      $region22: #{tpu_custom_call.1} parent=5 // pred_check_branch
        %201 = sbr.rel (%p199) target = $region24
      $region23: #{tpu_custom_call.1} parent=5 // pred_region
        // Predicated region
        $region25: #{tpu_custom_call.1} parent=23 // pred_check
          %p202 = pneg %p41
        $region26: #{tpu_custom_call.1} parent=23 // pred_check_branch
          %204 = sbr.rel (%p202) target = $region28
        $region27: #{tpu_custom_call.1} parent=23 // pred_region
          %s205 = sand.u32 %s31, 1
          %s206 = scalar_lea.sflag [#allocation3], %s205
          %s207 = sand.u32 %s31, 1
          %s208 = smul.addr %s207, 16
          %s209 = scalar_lea.vmem [#allocation2], %s208
          %s211 = ssub.s32 256, 256
          %212 = vsyncadd %s206, %s211
          %s213 = smul.addr %s21, 2
          %s214 = smul.addr %s213, 128
          %s215 = scalar_lea.hbm %s0, %s214
          %s216 = sshll.u32 %s209, 4
          %s217 = int_to_ptr.vmem [resolvable:$true] %s216
          %222 = dma.hbm_to_vmem [thread:$0]  %s215, 256, %s217, %s206, 128, 128, 8
        $region28: #{tpu_custom_call.1} parent=23 // pred_fallthru
          _
        // Predicated region
        $region29: #{tpu_custom_call.1} parent=23 // pred_check
          %p223 = pneg %p67
        $region30: #{tpu_custom_call.1} parent=23 // pred_check_branch
          %225 = sbr.rel (%p223) target = $region32
        $region31: #{tpu_custom_call.1} parent=23 // pred_region
          %s226 = sand.u32 %s21, 1
          %s227 = scalar_lea.sflag [#allocation6], %s226
          %s228 = sand.u32 %s57, 1
          %s229 = smul.addr %s228, 32
          %s230 = scalar_lea.vmem [#allocation5], %s229
          %s232 = ssub.s32 512, 512
          %233 = vsyncadd %s227, %s232
          %s234 = smul.addr %s21, 8
          %s235 = smul.addr %s234, 64
          %s236 = scalar_lea.hbm %s1, %s235
          %s237 = sshll.u32 %s230, 4
          %s238 = int_to_ptr.vmem [resolvable:$true] %s237
          %243 = dma.hbm_to_vmem [thread:$0]  %s236, 512, %s238, %s227, 64, 64, 4
        $region32: #{tpu_custom_call.1} parent=23 // pred_fallthru
          _
        // Predicated region
        $region33: #{tpu_custom_call.1} parent=23 // pred_check
          %p244 = pneg %p93
        $region34: #{tpu_custom_call.1} parent=23 // pred_check_branch
          %246 = sbr.rel (%p244) target = $region36
        $region35: #{tpu_custom_call.1} parent=23 // pred_region
          %s247 = sand.u32 %s21, 1
          %s248 = scalar_lea.sflag [#allocation6], %s247
          %s249 = sand.u32 %s83, 1
          %s250 = smul.addr %s249, 16
          %s251 = scalar_lea.vmem [#allocation7], %s250
          %s253 = ssub.s32 256, 256
          %254 = vsyncadd %s248, %s253
          %s255 = smul.addr %s21, 2
          %s256 = smul.addr %s255, 128
          %s257 = scalar_lea.hbm %s2, %s256
          %s258 = sshll.u32 %s251, 4
          %s259 = int_to_ptr.vmem [resolvable:$true] %s258
          %264 = dma.hbm_to_vmem [thread:$0]  %s257, 256, %s259, %s248, 128, 128, 8
        $region36: #{tpu_custom_call.1} parent=23 // pred_fallthru
          _
      $region24: #{tpu_custom_call.1} parent=5 // pred_fallthru
        _
      %p265 = scmp.le.s32.totalorder 1, %s21
      %p266 = scmp.lt.s32.totalorder %s21, 3
      %p267 = pnand %p265, %p266
      %p268 = pneg %p267
      // Predicated region
      $region37: #{tpu_custom_call.1} parent=5 // pred_check
        _
      $region38: #{tpu_custom_call.1} parent=5 // pred_check_branch
        %270 = sbr.rel (%p267) target = $region40
      $region39: #{tpu_custom_call.1} parent=5 // pred_region
        %s271 = ssub.s32 %s21, 1
        %s272 = sand.u32 %s34, 1
        %s273 = scalar_lea.sflag [#allocation3], %s272
        %s274 = sand.u32 %s34, 1
        %s275 = smul.addr %s274, 16
        %s276 = scalar_lea.vmem [#allocation2], %s275
        // Predicated region
        $region41: #{tpu_custom_call.1} parent=39 // pred_check
          %p277 = pneg %p47
        $region42: #{tpu_custom_call.1} parent=39 // pred_check_branch
          %279 = sbr.rel (%p277) target = $region44
        $region43: #{tpu_custom_call.1} parent=39 // pred_region
          %280 = dma.done %s273, 256
        $region44: #{tpu_custom_call.1} parent=39 // pred_fallthru
          _
        %s281 = sand.u32 %s26, 1
        %s282 = scalar_lea.sflag [#allocation6], %s281
        %s283 = sand.u32 %s60, 1
        %s284 = smul.addr %s283, 32
        %s285 = scalar_lea.vmem [#allocation5], %s284
        // Predicated region
        $region45: #{tpu_custom_call.1} parent=39 // pred_check
          %p286 = pneg %p73
        $region46: #{tpu_custom_call.1} parent=39 // pred_check_branch
          %288 = sbr.rel (%p286) target = $region48
        $region47: #{tpu_custom_call.1} parent=39 // pred_region
          %289 = dma.done %s282, 512
        $region48: #{tpu_custom_call.1} parent=39 // pred_fallthru
          _
        %s290 = sand.u32 %s26, 1
        %s291 = scalar_lea.sflag [#allocation6], %s290
        %s292 = sand.u32 %s86, 1
        %s293 = smul.addr %s292, 16
        %s294 = scalar_lea.vmem [#allocation7], %s293
        // Predicated region
        $region49: #{tpu_custom_call.1} parent=39 // pred_check
          %p295 = pneg %p99
        $region50: #{tpu_custom_call.1} parent=39 // pred_check_branch
          %297 = sbr.rel (%p295) target = $region52
        $region51: #{tpu_custom_call.1} parent=39 // pred_region
          %298 = dma.done %s291, 256
        $region52: #{tpu_custom_call.1} parent=39 // pred_fallthru
          _
        // Predicated region
        $region53: #{tpu_custom_call.1} parent=39 // pred_check
          %p299 = pneg %p141
        $region54: #{tpu_custom_call.1} parent=39 // pred_check_branch
          %301 = sbr.rel (%p299) target = $region56
        $region55: #{tpu_custom_call.1} parent=39 // pred_region
          %302 = dma.done [#allocation9], 128
        $region56: #{tpu_custom_call.1} parent=39 // pred_fallthru
          _
        %s303 = sand.u32 %s34, 1
        %s304 = scalar_lea.sflag [#allocation3], %s303
        %s305 = sand.u32 %s34, 1
        %s306 = smul.addr %s305, 16
        %s307 = scalar_lea.vmem [#allocation2], %s306
        %p308 = pneg %p47
        %p309 = pneg %p44
        %s310 = sand.u32 %s26, 1
        %s311 = scalar_lea.sflag [#allocation6], %s310
        %s312 = sand.u32 %s60, 1
        %s313 = smul.addr %s312, 32
        %s314 = scalar_lea.vmem [#allocation5], %s313
        %p315 = pneg %p73
        %p316 = pneg %p70
        %s317 = sand.u32 %s26, 1
        %s318 = scalar_lea.sflag [#allocation6], %s317
        %s319 = sand.u32 %s86, 1
        %s320 = smul.addr %s319, 16
        %s321 = scalar_lea.vmem [#allocation7], %s320
        %p322 = pneg %p99
        %p323 = pneg %p96
        %p324 = pneg %p120
        %p325 = pneg %p117
        %p326 = pneg %p141
        %p327 = pneg %p138
        %p328 = pneg %p167
        %p329 = pneg %p164
        %s330 = sand.u32 %s154, 1
        %s331 = scalar_lea.sflag [#allocation4], %s330
        %s332 = sand.u32 %s154, 1
        %s333 = smul.addr %s332, 8
        %s334 = scalar_lea.vmem [#allocation10], %s333
        %v336 = vld [vmem:[%s3] sm:$0xf]
        %v337 = vld [vmem:[%s3 + $0x4] sm:$0xf]
        %v338 = vld [vmem:[#allocation8] sm:$0xf]
        %v339 = vld [vmem:[#allocation8 + $0x4] sm:$0xf]
        %v340 = vld [vmem:[%s276] sm:$0xff]
        %v341 = vld [vmem:[%s276 + $0x8] sm:$0xff]
        %v342 = vld [vmem:[%s294] sm:$0xff]
        %v343 = vld [vmem:[%s294 + $0x8] sm:$0xff]
        %v344 = vmul.f32 %v342, %v342
        %v345 = vmul.f32 %v343, %v343
        %vm346 = vcmp.gt.f32.partialorder %v340, 0.1
        %vm347 = vcmp.gt.f32.partialorder %v341, 0.1
        %v348 = vsel %vm346, 1.0, 0.0
        %v349 = vsel %vm347, 1.0, 0.0
        %v350 = vpack.c.bf16 %v349, %v348
        %v351 = vpack.c.bf16 %v343, %v342
        %v352 = vpack.c.bf16 %v345, %v344
        %v355 = vunpack.c.l.b16 %v338
        %v356 = vunpack.c.l.b16 %v339
        %v357 = vpack.c.b16 %v356, %v355
        %vm359 = vcmask 130048
        %v361 = vsel %vm359, %v350, 0
        %v364 = vsel %vm359, %v351, 0
        %v367 = vsel %vm359, %v352, 0
        %369 = vmatprep.subr.bf16.mxu0 0
        %370 = vmatpush1.bf16.msra.mxu0 %v357
        %371 = vmatprep.subr.bf16.mxu0 0
        %372 = vmatpush1.bf16.msra.mxu0 0
        %373 = vmatprep.subr.bf16.mxu0 0
        %374 = vmatpush1.bf16.msra.mxu0 0
        %375 = vmatprep.subr.bf16.mxu0 0
        %376 = vmatpush1.bf16.msra.mxu0 0
        %377 = vmatprep.subr.bf16.mxu0 0
        %378 = vmatpush1.bf16.msra.mxu0 0
        %379 = vmatprep.subr.bf16.mxu0 0
        %380 = vmatpush1.bf16.msra.mxu0 0
        %381 = vmatprep.subr.bf16.mxu0 0
        %382 = vmatpush1.bf16.msra.mxu0 0
        %383 = vmatprep.subr.bf16.mxu0 0
        %384 = vmatpush1.bf16.msra.mxu0 0
        %385 = vmatprep.subr.bf16.mxu0 0
        %386 = vmatpush1.bf16.msra.mxu0 0
        %387 = vmatprep.subr.bf16.mxu0 0
        %388 = vmatpush1.bf16.msra.mxu0 0
        %389 = vmatprep.subr.bf16.mxu0 0
        %390 = vmatpush1.bf16.msra.mxu0 0
        %391 = vmatprep.subr.bf16.mxu0 0
        %392 = vmatpush1.bf16.msra.mxu0 0
        %393 = vmatprep.subr.bf16.mxu0 0
        %394 = vmatpush1.bf16.msra.mxu0 0
        %395 = vmatprep.subr.bf16.mxu0 0
        %396 = vmatpush1.bf16.msra.mxu0 0
        %397 = vmatprep.subr.bf16.mxu0 0
        %398 = vmatpush1.bf16.msra.mxu0 0
        %399 = vmatprep.subr.bf16.mxu0 0
        %400 = vmatpush1.bf16.msra.mxu0 0
        %401 = vmatprep.mubr.bf16.mxu0 0
        %402 = vmatmul.mubr.bf16.gmra.mrb[0].mxu0 %v361
        %v403 = vpop.f32.mrb[0].mxu0
        %v404 = vadd.f32 0.0, %v403
        %v405 = vpop.f32.mrb[0].mxu0
        %v406 = vpop.f32.mrb[0].mxu0
        %v407 = vadd.f32 0.0, %v406
        %v408 = vpop.f32.mrb[0].mxu0
        %409 = vmatprep.mubr.bf16.mxu0 0
        %410 = vmatmul.mubr.bf16.gmra.mrb[0].mxu0 %v364
        %v411 = vpop.f32.mrb[0].mxu0
        %v412 = vadd.f32 0.0, %v411
        %v413 = vpop.f32.mrb[0].mxu0
        %v414 = vpop.f32.mrb[0].mxu0
        %v415 = vadd.f32 0.0, %v414
        %v416 = vpop.f32.mrb[0].mxu0
        %417 = vmatprep.mubr.bf16.mxu0 0
        %418 = vmatmul.mubr.bf16.gmra.mrb[0].mxu0 %v367
        %v419 = vpop.f32.mrb[0].mxu0
        %v420 = vadd.f32 0.0, %v419
        %v421 = vpop.f32.mrb[0].mxu0
        %v422 = vpop.f32.mrb[0].mxu0
        %v423 = vadd.f32 0.0, %v422
        %v424 = vpop.f32.mrb[0].mxu0
        %425 = vdwg.mxu0
        %v426 = vpack.c.bf16 %v407, %v404
        %v427 = vpack.c.bf16 %v415, %v412
        %v428 = vpack.c.bf16 %v423, %v420
        %430 = vrot.lane.b32.xlu0 %v427, 16
        %v431 = vpop.permute.xlu0 %430
        %433 = vrot.lane.b32.xlu0 %v428, 32
        %v434 = vpop.permute.xlu0 %433
        %v437 = vsel %vm359, %v426, %v431
        %vm438 = vcmask 261120
        %v440 = vsel %vm438, %v437, %v434
        %v444 = vunpack.c.l.b16 %v336
        %v445 = vunpack.c.l.b16 %v337
        %v446 = vpack.c.b16 %v445, %v444
        %v448 = vsel %vm359, %v446, 0
        %450 = vmatprep.subr.bf16.mxu0 0
        %451 = vmatpush1.bf16.msra.mxu0 %v440
        %452 = vmatprep.subr.bf16.mxu0 0
        %453 = vmatpush1.bf16.msra.mxu0 0
        %454 = vmatprep.subr.bf16.mxu0 0
        %455 = vmatpush1.bf16.msra.mxu0 0
        %456 = vmatprep.subr.bf16.mxu0 0
        %457 = vmatpush1.bf16.msra.mxu0 0
        %458 = vmatprep.subr.bf16.mxu0 0
        %459 = vmatpush1.bf16.msra.mxu0 0
        %460 = vmatprep.subr.bf16.mxu0 0
        %461 = vmatpush1.bf16.msra.mxu0 0
        %462 = vmatprep.subr.bf16.mxu0 0
        %463 = vmatpush1.bf16.msra.mxu0 0
        %464 = vmatprep.subr.bf16.mxu0 0
        %465 = vmatpush1.bf16.msra.mxu0 0
        %466 = vmatprep.subr.bf16.mxu0 0
        %467 = vmatpush1.bf16.msra.mxu0 0
        %468 = vmatprep.subr.bf16.mxu0 0
        %469 = vmatpush1.bf16.msra.mxu0 0
        %470 = vmatprep.subr.bf16.mxu0 0
        %471 = vmatpush1.bf16.msra.mxu0 0
        %472 = vmatprep.subr.bf16.mxu0 0
        %473 = vmatpush1.bf16.msra.mxu0 0
        %474 = vmatprep.subr.bf16.mxu0 0
        %475 = vmatpush1.bf16.msra.mxu0 0
        %476 = vmatprep.subr.bf16.mxu0 0
        %477 = vmatpush1.bf16.msra.mxu0 0
        %478 = vmatprep.subr.bf16.mxu0 0
        %479 = vmatpush1.bf16.msra.mxu0 0
        %480 = vmatprep.subr.bf16.mxu0 0
        %481 = vmatpush1.bf16.msra.mxu0 0
        %482 = vmatprep.mubr.bf16.mxu0 0
        %483 = vmatmul.mubr.bf16.gmra.mrb[0].mxu0 %v448
        %v484 = vpop.f32.mrb[0].mxu0
        %v485 = vadd.f32 0.0, %v484
        %v486 = vpop.f32.mrb[0].mxu0
        %v487 = vpop.f32.mrb[0].mxu0
        %v488 = vadd.f32 0.0, %v487
        %v489 = vpop.f32.mrb[0].mxu0
        %490 = vdwg.mxu0
        %v491 = vadd.f32 %v485, 1e-06
        %v492 = vadd.f32 %v488, 1e-06
        %v493 = vrcp.pop %v491
        %v494 = vmul.f32 1.0, %v493
        %v495 = vrcp.pop %v492
        %v496 = vmul.f32 1.0, %v495
        %499 = vrot.lane.b32.xlu0 %v494, 16
        %v500 = vpop.permute.xlu0 %499
        %501 = vrot.lane.b32.xlu0 %v496, 16
        %v502 = vpop.permute.xlu0 %501
        %v505 = vmul.f32 %v485, %v500
        %v506 = vmul.f32 %v488, %v502
        %507 = vrot.lane.b32.xlu0 %v494, 32
        %v508 = vpop.permute.xlu0 %507
        %509 = vrot.lane.b32.xlu0 %v496, 32
        %v510 = vpop.permute.xlu0 %509
        %v513 = vmul.f32 %v485, %v508
        %v514 = vmul.f32 %v488, %v510
        %517 = vrot.lane.b32.xlu0 %v340, 16
        %v518 = vpop.permute.xlu0 %517
        %519 = vrot.lane.b32.xlu0 %v341, 16
        %v520 = vpop.permute.xlu0 %519
        %v523 = vmul.f32 %v505, %v518
        %v524 = vmul.f32 %v506, %v520
        %v525 = vld [vmem:[%s285] sm:$0xf]
        %v526 = vld [vmem:[%s285 + $0x4] sm:$0xf]
        %v527 = vld [vmem:[%s285 + $0x8] sm:$0xf]
        %v528 = vld [vmem:[%s285 + $0xc] sm:$0xf]
        %v529 = vld [vmem:[%s285 + $0x10] sm:$0xf]
        %v530 = vld [vmem:[%s285 + $0x14] sm:$0xf]
        %v531 = vld [vmem:[%s285 + $0x18] sm:$0xf]
        %v532 = vld [vmem:[%s285 + $0x1c] sm:$0xf]
        %v533 = vunpack.c.l.bf16 %v525
        %v534 = vunpack.c.l.bf16 %v526
        %v535 = vunpack.c.l.bf16 %v527
        %v536 = vunpack.c.l.bf16 %v528
        %v537 = vunpack.c.l.bf16 %v529
        %v538 = vunpack.c.l.bf16 %v530
        %v539 = vunpack.c.l.bf16 %v531
        %v540 = vunpack.c.l.bf16 %v532
        %v541 = vmul.f32 %v533, %v533
        %v542 = vmul.f32 %v534, %v534
        %v543 = vmul.f32 %v535, %v535
        %v544 = vmul.f32 %v536, %v536
        %v545 = vmul.f32 %v537, %v537
        %v546 = vmul.f32 %v538, %v538
        %v547 = vmul.f32 %v539, %v539
        %v548 = vmul.f32 %v540, %v540
        %551 = vrot.lane.b32.xlu0 %v523, 112
        %v552 = vpop.permute.xlu0 %551
        %553 = vrot.lane.b32.xlu0 %v524, 112
        %v554 = vpop.permute.xlu0 %553
        %v557 = vmul.f32 %v541, %v552
        %v558 = vmul.f32 %v542, %v554
        %v559 = vmul.f32 %v543, %v552
        %v560 = vmul.f32 %v544, %v554
        %v561 = vmul.f32 %v545, %v552
        %v562 = vmul.f32 %v546, %v554
        %v563 = vmul.f32 %v547, %v552
        %v564 = vmul.f32 %v548, %v554
        %v565 = vsel %vm359, %v557, 0.0
        %566 = vadd.xlane.f32.xlu0 %v565
        %v567 = vpop.xlane.xlu0 %566
        %v568 = vsel %vm359, %v558, 0.0
        %569 = vadd.xlane.f32.xlu0 %v568
        %v570 = vpop.xlane.xlu0 %569
        %v571 = vsel %vm359, %v559, 0.0
        %572 = vadd.xlane.f32.xlu0 %v571
        %v573 = vpop.xlane.xlu0 %572
        %v574 = vsel %vm359, %v560, 0.0
        %575 = vadd.xlane.f32.xlu0 %v574
        %v576 = vpop.xlane.xlu0 %575
        %v577 = vsel %vm359, %v561, 0.0
        %578 = vadd.xlane.f32.xlu0 %v577
        %v579 = vpop.xlane.xlu0 %578
        %v580 = vsel %vm359, %v562, 0.0
        %581 = vadd.xlane.f32.xlu0 %v580
        %v582 = vpop.xlane.xlu0 %581
        %v583 = vsel %vm359, %v563, 0.0
        %584 = vadd.xlane.f32.xlu0 %v583
        %v585 = vpop.xlane.xlu0 %584
        %v586 = vsel %vm359, %v564, 0.0
        %587 = vadd.xlane.f32.xlu0 %v586
        %v588 = vpop.xlane.xlu0 %587
        %v589 = vadd.f32 %v567, %v570
        %v590 = vrot.slane %v589, 4
        %v591 = vadd.f32 %v589, %v590
        %v592 = vrot.slane %v591, 2
        %v593 = vadd.f32 %v591, %v592
        %v594 = vrot.slane %v593, 1
        %v595 = vadd.f32 %v593, %v594
        %v596 = vadd.f32 %v573, %v576
        %v597 = vrot.slane %v596, 4
        %v598 = vadd.f32 %v596, %v597
        %v599 = vrot.slane %v598, 2
        %v600 = vadd.f32 %v598, %v599
        %v601 = vrot.slane %v600, 1
        %v602 = vadd.f32 %v600, %v601
        %v603 = vadd.f32 %v579, %v582
        %v604 = vrot.slane %v603, 4
        %v605 = vadd.f32 %v603, %v604
        %v606 = vrot.slane %v605, 2
        %v607 = vadd.f32 %v605, %v606
        %v608 = vrot.slane %v607, 1
        %v609 = vadd.f32 %v607, %v608
        %v610 = vadd.f32 %v585, %v588
        %v611 = vrot.slane %v610, 4
        %v612 = vadd.f32 %v610, %v611
        %v613 = vrot.slane %v612, 2
        %v614 = vadd.f32 %v612, %v613
        %v615 = vrot.slane %v614, 1
        %v616 = vadd.f32 %v614, %v615
        %619 = vrot.lane.b32.xlu0 %v513, 96
        %v620 = vpop.permute.xlu0 %619
        %621 = vrot.lane.b32.xlu0 %v514, 96
        %v622 = vpop.permute.xlu0 %621
        %v625 = vmul.f32 %v541, %v620
        %v626 = vmul.f32 %v542, %v622
        %v627 = vmul.f32 %v543, %v620
        %v628 = vmul.f32 %v544, %v622
        %v629 = vmul.f32 %v545, %v620
        %v630 = vmul.f32 %v546, %v622
        %v631 = vmul.f32 %v547, %v620
        %v632 = vmul.f32 %v548, %v622
        %v633 = vsel %vm359, %v625, 0.0
        %634 = vadd.xlane.f32.xlu0 %v633
        %v635 = vpop.xlane.xlu0 %634
        %v636 = vsel %vm359, %v626, 0.0
        %637 = vadd.xlane.f32.xlu0 %v636
        %v638 = vpop.xlane.xlu0 %637
        %v639 = vsel %vm359, %v627, 0.0
        %640 = vadd.xlane.f32.xlu0 %v639
        %v641 = vpop.xlane.xlu0 %640
        %v642 = vsel %vm359, %v628, 0.0
        %643 = vadd.xlane.f32.xlu0 %v642
        %v644 = vpop.xlane.xlu0 %643
        %v645 = vsel %vm359, %v629, 0.0
        %646 = vadd.xlane.f32.xlu0 %v645
        %v647 = vpop.xlane.xlu0 %646
        %v648 = vsel %vm359, %v630, 0.0
        %649 = vadd.xlane.f32.xlu0 %v648
        %v650 = vpop.xlane.xlu0 %649
        %v651 = vsel %vm359, %v631, 0.0
        %652 = vadd.xlane.f32.xlu0 %v651
        %v653 = vpop.xlane.xlu0 %652
        %v654 = vsel %vm359, %v632, 0.0
        %655 = vadd.xlane.f32.xlu0 %v654
        %v656 = vpop.xlane.xlu0 %655
        %v657 = vadd.f32 %v635, %v638
        %v658 = vrot.slane %v657, 4
        %v659 = vadd.f32 %v657, %v658
        %v660 = vrot.slane %v659, 2
        %v661 = vadd.f32 %v659, %v660
        %v662 = vrot.slane %v661, 1
        %v663 = vadd.f32 %v661, %v662
        %v664 = vadd.f32 %v641, %v644
        %v665 = vrot.slane %v664, 4
        %v666 = vadd.f32 %v664, %v665
        %v667 = vrot.slane %v666, 2
        %v668 = vadd.f32 %v666, %v667
        %v669 = vrot.slane %v668, 1
        %v670 = vadd.f32 %v668, %v669
        %v671 = vadd.f32 %v647, %v650
        %v672 = vrot.slane %v671, 4
        %v673 = vadd.f32 %v671, %v672
        %v674 = vrot.slane %v673, 2
        %v675 = vadd.f32 %v673, %v674
        %v676 = vrot.slane %v675, 1
        %v677 = vadd.f32 %v675, %v676
        %v678 = vadd.f32 %v653, %v656
        %v679 = vrot.slane %v678, 4
        %v680 = vadd.f32 %v678, %v679
        %v681 = vrot.slane %v680, 2
        %v682 = vadd.f32 %v680, %v681
        %v683 = vrot.slane %v682, 1
        %v684 = vadd.f32 %v682, %v683
        %v685 = vadd.f32 %v663, 1e-06
        %v686 = vadd.f32 %v670, 1e-06
        %v687 = vadd.f32 %v677, 1e-06
        %v688 = vadd.f32 %v684, 1e-06
        %v689 = vrcp.pop %v685
        %v690 = vmul.f32 %v595, %v689
        %v691 = vrcp.pop %v686
        %v692 = vmul.f32 %v602, %v691
        %v693 = vrcp.pop %v687
        %v694 = vmul.f32 %v609, %v693
        %v695 = vrcp.pop %v688
        %v696 = vmul.f32 %v616, %v695
        %v697 = vmul.f32 %v690, %v541
        %v698 = vmul.f32 %v690, %v542
        %v699 = vmul.f32 %v692, %v543
        %v700 = vmul.f32 %v692, %v544
        %v701 = vmul.f32 %v694, %v545
        %v702 = vmul.f32 %v694, %v546
        %v703 = vmul.f32 %v696, %v547
        %v704 = vmul.f32 %v696, %v548
        %v705 = vsel %vm359, %v697, 0.0
        %v706 = vsel %vm359, %v699, 0.0
        %v707 = vadd.f32 %v705, %v706
        %v708 = vsel %vm359, %v701, 0.0
        %v709 = vadd.f32 %v707, %v708
        %v710 = vsel %vm359, %v703, 0.0
        %v711 = vadd.f32 %v709, %v710
        %v712 = vsel %vm359, %v698, 0.0
        %v713 = vsel %vm359, %v700, 0.0
        %v714 = vadd.f32 %v712, %v713
        %v715 = vsel %vm359, %v702, 0.0
        %v716 = vadd.f32 %v714, %v715
        %v717 = vsel %vm359, %v704, 0.0
        %v718 = vadd.f32 %v716, %v717
        %v719 = vmul.f32 %v711, %v340
        %v720 = vmul.f32 %v718, %v341
        %v721 = vmul.f32 %v690, %v690
        %v722 = vmul.f32 %v692, %v692
        %v723 = vmul.f32 %v694, %v694
        %v724 = vmul.f32 %v696, %v696
        %v725 = vmul.f32 %v721, %v541
        %v726 = vmul.f32 %v721, %v542
        %v727 = vmul.f32 %v722, %v543
        %v728 = vmul.f32 %v722, %v544
        %v729 = vmul.f32 %v723, %v545
        %v730 = vmul.f32 %v723, %v546
        %v731 = vmul.f32 %v724, %v547
        %v732 = vmul.f32 %v724, %v548
        %v733 = vsel %vm359, %v725, 0.0
        %v734 = vsel %vm359, %v727, 0.0
        %v735 = vadd.f32 %v733, %v734
        %v736 = vsel %vm359, %v729, 0.0
        %v737 = vadd.f32 %v735, %v736
        %v738 = vsel %vm359, %v731, 0.0
        %v739 = vadd.f32 %v737, %v738
        %v740 = vsel %vm359, %v726, 0.0
        %v741 = vsel %vm359, %v728, 0.0
        %v742 = vadd.f32 %v740, %v741
        %v743 = vsel %vm359, %v730, 0.0
        %v744 = vadd.f32 %v742, %v743
        %v745 = vsel %vm359, %v732, 0.0
        %v746 = vadd.f32 %v744, %v745
        %v747 = vpack.c.bf16 %v720, %v719
        %v748 = vpack.c.bf16 %v746, %v739
        %v750 = vsel %vm359, %v747, 0
        %v753 = vsel %vm359, %v748, 0
        %755 = vmatprep.subr.bf16.mxu0 0
        %756 = vmatpush1.bf16.msra.mxu0 %v357
        %757 = vmatprep.subr.bf16.mxu0 0
        %758 = vmatpush1.bf16.msra.mxu0 0
        %759 = vmatprep.subr.bf16.mxu0 0
        %760 = vmatpush1.bf16.msra.mxu0 0
        %761 = vmatprep.subr.bf16.mxu0 0
        %762 = vmatpush1.bf16.msra.mxu0 0
        %763 = vmatprep.subr.bf16.mxu0 0
        %764 = vmatpush1.bf16.msra.mxu0 0
        %765 = vmatprep.subr.bf16.mxu0 0
        %766 = vmatpush1.bf16.msra.mxu0 0
        %767 = vmatprep.subr.bf16.mxu0 0
        %768 = vmatpush1.bf16.msra.mxu0 0
        %769 = vmatprep.subr.bf16.mxu0 0
        %770 = vmatpush1.bf16.msra.mxu0 0
        %771 = vmatprep.subr.bf16.mxu0 0
        %772 = vmatpush1.bf16.msra.mxu0 0
        %773 = vmatprep.subr.bf16.mxu0 0
        %774 = vmatpush1.bf16.msra.mxu0 0
        %775 = vmatprep.subr.bf16.mxu0 0
        %776 = vmatpush1.bf16.msra.mxu0 0
        %777 = vmatprep.subr.bf16.mxu0 0
        %778 = vmatpush1.bf16.msra.mxu0 0
        %779 = vmatprep.subr.bf16.mxu0 0
        %780 = vmatpush1.bf16.msra.mxu0 0
        %781 = vmatprep.subr.bf16.mxu0 0
        %782 = vmatpush1.bf16.msra.mxu0 0
        %783 = vmatprep.subr.bf16.mxu0 0
        %784 = vmatpush1.bf16.msra.mxu0 0
        %785 = vmatprep.subr.bf16.mxu0 0
        %786 = vmatpush1.bf16.msra.mxu0 0
        %787 = vmatprep.mubr.bf16.mxu0 0
        %788 = vmatmul.mubr.bf16.gmra.mrb[0].mxu0 %v750
        %v789 = vpop.f32.mrb[0].mxu0
        %v790 = vadd.f32 0.0, %v789
        %v791 = vpop.f32.mrb[0].mxu0
        %v792 = vpop.f32.mrb[0].mxu0
        %v793 = vadd.f32 0.0, %v792
        %v794 = vpop.f32.mrb[0].mxu0
        %795 = vmatprep.mubr.bf16.mxu0 0
        %796 = vmatmul.mubr.bf16.gmra.mrb[0].mxu0 %v753
        %v797 = vpop.f32.mrb[0].mxu0
        %v798 = vadd.f32 0.0, %v797
        %v799 = vpop.f32.mrb[0].mxu0
        %v800 = vpop.f32.mrb[0].mxu0
        %v801 = vadd.f32 0.0, %v800
        %v802 = vpop.f32.mrb[0].mxu0
        %803 = vdwg.mxu0
        %v804 = vpack.c.bf16 %v793, %v790
        %v805 = vpack.c.bf16 %v801, %v798
        %807 = vrot.lane.b32.xlu0 %v805, 16
        %v808 = vpop.permute.xlu0 %807
        %v811 = vsel %vm359, %v804, %v808
        %813 = vmatprep.subr.bf16.mxu0 0
        %814 = vmatpush1.bf16.msra.mxu0 %v811
        %815 = vmatprep.subr.bf16.mxu0 0
        %816 = vmatpush1.bf16.msra.mxu0 0
        %817 = vmatprep.subr.bf16.mxu0 0
        %818 = vmatpush1.bf16.msra.mxu0 0
        %819 = vmatprep.subr.bf16.mxu0 0
        %820 = vmatpush1.bf16.msra.mxu0 0
        %821 = vmatprep.subr.bf16.mxu0 0
        %822 = vmatpush1.bf16.msra.mxu0 0
        %823 = vmatprep.subr.bf16.mxu0 0
        %824 = vmatpush1.bf16.msra.mxu0 0
        %825 = vmatprep.subr.bf16.mxu0 0
        %826 = vmatpush1.bf16.msra.mxu0 0
        %827 = vmatprep.subr.bf16.mxu0 0
        %828 = vmatpush1.bf16.msra.mxu0 0
        %829 = vmatprep.subr.bf16.mxu0 0
        %830 = vmatpush1.bf16.msra.mxu0 0
        %831 = vmatprep.subr.bf16.mxu0 0
        %832 = vmatpush1.bf16.msra.mxu0 0
        %833 = vmatprep.subr.bf16.mxu0 0
        %834 = vmatpush1.bf16.msra.mxu0 0
        %835 = vmatprep.subr.bf16.mxu0 0
        %836 = vmatpush1.bf16.msra.mxu0 0
        %837 = vmatprep.subr.bf16.mxu0 0
        %838 = vmatpush1.bf16.msra.mxu0 0
        %839 = vmatprep.subr.bf16.mxu0 0
        %840 = vmatpush1.bf16.msra.mxu0 0
        %841 = vmatprep.subr.bf16.mxu0 0
        %842 = vmatpush1.bf16.msra.mxu0 0
        %843 = vmatprep.subr.bf16.mxu0 0
        %844 = vmatpush1.bf16.msra.mxu0 0
        %845 = vmatprep.mubr.bf16.mxu0 0
        %846 = vmatmul.mubr.bf16.gmra.mrb[0].mxu0 %v448
        %v847 = vpop.f32.mrb[0].mxu0
        %v848 = vadd.f32 0.0, %v847
        %v849 = vpop.f32.mrb[0].mxu0
        %v850 = vpop.f32.mrb[0].mxu0
        %v851 = vadd.f32 0.0, %v850
        %v852 = vpop.f32.mrb[0].mxu0
        %853 = vdwg.mxu0
        %v854 = vmul.f32 %v848, %v494
        %v855 = vmul.f32 %v851, %v496
        %v856 = vmul.f32 %v848, %v500
        %v857 = vmul.f32 %v851, %v502
        %v858 = vmul.f32 %v854, %v348
        %v859 = vmul.f32 %v855, %v349
        %v860 = vsub.f32 1.0, %v348
        %v861 = vsub.f32 1.0, %v349
        %v862 = vadd.f32 %v858, %v860
        %v863 = vadd.f32 %v859, %v861
        %866 = vrot.lane.b32.xlu0 %v348, 16
        %v867 = vpop.permute.xlu0 %866
        %868 = vrot.lane.b32.xlu0 %v349, 16
        %v869 = vpop.permute.xlu0 %868
        %v872 = vmul.f32 %v856, %v867
        %v873 = vmul.f32 %v857, %v869
        %876 = vrot.lane.b32.xlu0 %v860, 16
        %v877 = vpop.permute.xlu0 %876
        %878 = vrot.lane.b32.xlu0 %v861, 16
        %v879 = vpop.permute.xlu0 %878
        %v882 = vadd.f32 %v872, %v877
        %v883 = vadd.f32 %v873, %v879
        %v884 = vadd.f32 %v862, 1e-09
        %v885 = vadd.f32 %v863, 1e-09
        %v886 = vadd.f32 %v882, 1e-09
        %v887 = vadd.f32 %v883, 1e-09
        %890 = vrot.lane.b32.xlu0 %v886, 112
        %v891 = vpop.permute.xlu0 %890
        %892 = vrot.lane.b32.xlu0 %v887, 112
        %v893 = vpop.permute.xlu0 %892
        %v896 = vrcp.pop %v891
        %v897 = vmul.f32 %v884, %v896
        %v898 = vrcp.pop %v893
        %v899 = vmul.f32 %v885, %v898
        %v900 = vsub.f32 %v342, %v897
        %v901 = vsub.f32 %v343, %v899
        %v902 = vmul.f32 %v900, %v900
        %v903 = vmul.f32 %v901, %v901
        %v904 = vsel %vm359, %v902, 0.0
        %v905 = vsel %vm359, %v903, 0.0
        %v906 = vadd.f32 %v904, %v905
        %907 = vadd.xlane.f32.xlu0 %v906
        %v908 = vpop.xlane.xlu0 %907
        %v909 = vrot.slane %v908, 4
        %v910 = vadd.f32 %v908, %v909
        %v911 = vrot.slane %v910, 2
        %v912 = vadd.f32 %v910, %v911
        %v913 = vrot.slane %v912, 1
        %v914 = vadd.f32 %v912, %v913
        %s915 = vtos %v914
        %v916 = vrcp.pop 256.0
        %s917 = vtos %v916
        %s918 = smul.f32 %s915, %s917
        %v919 = vstv %s918
        %920 = vst [vmem:[%s334] sm:$0xff] %v919
        %s921 = sand.u32 %s154, 1
        %s922 = scalar_lea.sflag [#allocation4], %s921
        %s923 = sand.u32 %s154, 1
        %s924 = smul.addr %s923, 8
        %s925 = scalar_lea.vmem [#allocation10], %s924
        // Predicated region
        $region57: #{tpu_custom_call.1} parent=39 // pred_check
          %p926 = pneg %p164
        $region58: #{tpu_custom_call.1} parent=39 // pred_check_branch
          %928 = sbr.rel (%p926) target = $region60
        $region59: #{tpu_custom_call.1} parent=39 // pred_region
          %s930 = ssub.s32 128, 128
          %931 = vsyncadd %s922, %s930
          %s932 = smul.addr %s26, 128
          %s933 = scalar_lea.hbm %s5, %s932
          %s935 = sshll.u32 %s925, 4
          %s936 = int_to_ptr.vmem [resolvable:$true] %s935
          %938 = dma.vmem_to_hbm [thread:$0]  %s936, 128, %s933, %s922
        $region60: #{tpu_custom_call.1} parent=39 // pred_fallthru
          _
      $region40: #{tpu_custom_call.1} parent=5 // pred_fallthru
        _
      %p939 = scmp.le.s32.totalorder 2, %s21
      // Predicated region
      $region61: #{tpu_custom_call.1} parent=5 // pred_check
        %p940 = pneg %p939
      $region62: #{tpu_custom_call.1} parent=5 // pred_check_branch
        %942 = sbr.rel (%p940) target = $region64
      $region63: #{tpu_custom_call.1} parent=5 // pred_region
        %s943 = ssub.s32 %s21, 2
        // Predicated region
        $region65: #{tpu_custom_call.1} parent=63 // pred_check
          %p944 = pneg %p170
        $region66: #{tpu_custom_call.1} parent=63 // pred_check_branch
          %946 = sbr.rel (%p944) target = $region68
        $region67: #{tpu_custom_call.1} parent=63 // pred_region
          %s947 = sand.u32 %s155, 1
          %s948 = scalar_lea.sflag [#allocation4], %s947
          %s949 = sand.u32 %s155, 1
          %s950 = smul.addr %s949, 8
          %s951 = scalar_lea.vmem [#allocation10], %s950
          %952 = dma.done %s948, 128
        $region68: #{tpu_custom_call.1} parent=63 // pred_fallthru
          _
      $region64: #{tpu_custom_call.1} parent=5 // pred_fallthru
        _
    $region6: #{tpu_custom_call.1} parent=1 // loop_footer
      %s25 = sadd.s32 1, %s21
    $region7: #{tpu_custom_call.1} parent=1 // loop_footer_branch
      %20 = sbr.rel target = $region3
    $region8: #{tpu_custom_call.1} parent=1 // loop_exit
      _
    %953 = vsyncpa [#allocation3], 1
    %s954 = scalar_lea.sflag [#allocation3], 1
    %955 = vsyncpa %s954, 1
    %956 = vsyncpa [#allocation6], 1
    %s957 = scalar_lea.sflag [#allocation6], 1
    %958 = vsyncpa %s957, 1
    %959 = vsyncpa [#allocation9], 1
    %960 = vsyncpa [#allocation4], 1
    %s961 = scalar_lea.sflag [#allocation4], 1
    %962 = vsyncpa %s961, 1

</llo_original>
